<compile_context>
chip_gen: v7x
topology: tpu7x:2x2x1
jax: 0.10.0
libtpu: 0.0.40
codegen_flags: <defaults>
</compile_context>

<pallas_src>
import functools

import jax
import jax.numpy as jnp
from jax.experimental import pallas as pl
from jax.experimental.pallas import tpu as pltpu


def _single_conv_kernel(x_ref, w_ref, shift_ref, o_ref, *scratch, H, W, num_k):
    """One grid step: B_tile images x one (Cout_t x Cin_t) channel tile.

    x_ref:     (B_tile, Cin_t, HW_pad)   flattened-NCHW input slab
    w_ref:     (9, Cout_t, Cin_t)        BN-scale-folded weights, tap-major
    shift_ref: (Cout_t, 1)               folded BN shift (includes conv bias)
    o_ref:     (B_tile, Cout_t, HW_pad)
    scratch:   () if num_k == 1 else (acc_ref (B_tile, Cout_t, HW_pad) f32,)
    """
    B_tile, Cin_t, HW_pad = x_ref.shape
    Cout_t = w_ref.shape[1]
    HW = H * W
    single_k = (num_k == 1)
    acc_ref = None if single_k else scratch[0]

    if not single_k:
        k = pl.program_id(2)

        @pl.when(k == 0)
        def _():
            acc_ref[...] = jnp.zeros_like(acc_ref)

    # --- the 4 base boundary masks, computed once per grid step -------------
    p = jax.lax.broadcasted_iota(jnp.int32, (1, HW_pad), 1)   # flat position
    top_ok = p >= W                      # output row > 0    (oy = -1 taps)
    bot_ok = p < (HW - W)                # output row < H-1  (oy = +1 taps)
    if (W & (W - 1)) == 0:               # power-of-two width: cheap column
        col = jnp.bitwise_and(p, W - 1)
    else:
        col = p - (p // W) * W
    left_ok = col >= 1                   # output col > 0    (ox = -1 taps)
    right_ok = col < (W - 1)             # output col < W-1  (ox = +1 taps)
    row_mask = {-1: top_ok, 0: None, 1: bot_ok}
    col_mask = {-1: left_ok, 0: None, 1: right_ok}

    offsets = [(oy, ox) for oy in (-1, 0, 1) for ox in (-1, 0, 1)]
    masks = []
    for oy, ox in offsets:
        rm, cm = row_mask[oy], col_mask[ox]
        if rm is None and cm is None:
            masks.append(None)           # centre tap: always valid
        elif rm is None:
            masks.append(cm)
        elif cm is None:
            masks.append(rm)
        else:
            masks.append(jnp.logical_and(rm, cm))

    shift = shift_ref[...]               # (Cout_t, 1)
    zero = jnp.zeros((), dtype=x_ref.dtype)

    for b in range(B_tile):              # few samples per step; fully unrolled
        xb = x_ref[b]                    # (Cin_t, HW_pad)
        if single_k:
            acc = jnp.zeros((Cout_t, HW_pad), jnp.float32)
        else:
            acc = acc_ref[b]
        # Nine accumulating per-tap matmuls; taps never materialized in VMEM.
        for t, (oy, ox) in enumerate(offsets):
            s = oy * W + ox              # flat offset of this tap
            if s == 0:
                tap = xb                 # centre tap: no shift, no mask
            else:
                rolled = pltpu.roll(xb, shift=(-s) % HW_pad, axis=1)
                tap = jnp.where(masks[t], rolled, zero)
            acc = acc + jnp.dot(w_ref[t], tap,
                                preferred_element_type=jnp.float32)

        if single_k:
            o_ref[b] = jnp.maximum(acc + shift, 0.0).astype(o_ref.dtype)
        else:
            @pl.when(k < num_k - 1)
            def _(b=b, acc=acc):
                acc_ref[b] = acc

            @pl.when(k == num_k - 1)
            def _(b=b, acc=acc):
                o_ref[b] = jnp.maximum(acc + shift, 0.0).astype(o_ref.dtype)


def single_conv_forward(x_nchw, weight_oihw, bias, gamma, beta, run_mean,
                        run_var, eps=1e-5, use_bf16_operands=False):
    """Forward of single_conv. x_nchw: (N, Cin, H, W) -> (N, Cout, H, W)."""
    N, Cin, H, W = x_nchw.shape
    Cout = weight_oihw.shape[0]
    HW = H * W
    HW_pad = ((HW + 127) // 128) * 128   # lane-dense stores (multiple of 128)

    # ---- fold eval-mode BatchNorm into the conv weights / shift (JAX glue) --
    scale = gamma / jnp.sqrt(run_var + eps)                     # (Cout,)
    w_scaled = weight_oihw * scale[:, None, None, None]         # (Cout,Cin,3,3)
    # Tap-major weights: w_k[ky*3+kx, co, ci] = w_scaled[co, ci, ky, kx]
    w_k = jnp.transpose(w_scaled, (2, 3, 0, 1)).reshape(9, Cout, Cin)
    shift = ((bias - run_mean) * scale + beta).reshape(Cout, 1).astype(jnp.float32)

    op_dtype = jnp.bfloat16 if use_bf16_operands else jnp.float32
    w_k = w_k.astype(op_dtype)

    x_flat = x_nchw.reshape(N, Cin, HW).astype(op_dtype)        # free reshape
    if HW_pad != HW:
        x_flat = jnp.pad(x_flat, ((0, 0), (0, 0), (0, HW_pad - HW)))

    # ---- tiling choices ------------------------------------------------------
    Cin_t = 128 if (Cin > 128 and Cin % 128 == 0) else Cin
    Cout_t = 128 if (Cout > 128 and Cout % 128 == 0) else Cout
    num_k = Cin // Cin_t

    itemsize = jnp.dtype(op_dtype).itemsize
    per_sample = (2 * Cin_t * itemsize + 3 * Cout_t * 4 + 2 * Cin_t * 4) * HW_pad
    B_tile = max(1, min(N, 8, (16 << 20) // max(per_sample, 1)))
    while N % B_tile:
        B_tile -= 1

    acc_bytes = 0 if num_k == 1 else B_tile * Cout_t * HW_pad * 4
    need = (2 * B_tile * Cin_t * HW_pad * itemsize        # double-buffered in
            + 2 * B_tile * Cout_t * HW_pad * 4            # double-buffered out
            + 2 * 9 * Cout_t * Cin_t * itemsize           # weights
            + acc_bytes
            + 4 * (Cin_t + Cout_t) * HW_pad * 4)          # live temporaries
    vmem_limit = int(min(max(2 * need + (8 << 20), 32 << 20), 64 << 20))

    kernel = functools.partial(_single_conv_kernel, H=H, W=W, num_k=num_k)
    scratch_shapes = ([] if num_k == 1
                      else [pltpu.VMEM((B_tile, Cout_t, HW_pad), jnp.float32)])

    out_flat = pl.pallas_call(
        kernel,
        out_shape=jax.ShapeDtypeStruct((N, Cout, HW_pad), jnp.float32),
        grid_spec=pltpu.PrefetchScalarGridSpec(
            num_scalar_prefetch=0,
            grid=(N // B_tile, Cout // Cout_t, num_k),
            in_specs=[
                pl.BlockSpec((B_tile, Cin_t, HW_pad),
                             lambda nb, co, ci: (nb, ci, 0)),
                pl.BlockSpec((9, Cout_t, Cin_t),
                             lambda nb, co, ci: (0, co, ci)),
                pl.BlockSpec((Cout_t, 1),
                             lambda nb, co, ci: (co, 0)),
            ],
            out_specs=pl.BlockSpec((B_tile, Cout_t, HW_pad),
                                   lambda nb, co, ci: (nb, co, 0)),
            scratch_shapes=scratch_shapes,
        ),
        compiler_params=pltpu.CompilerParams(
            dimension_semantics=("parallel", "parallel", "arbitrary"),
            vmem_limit_bytes=vmem_limit),
    )(x_flat, w_k, shift)

    return out_flat[:, :, :HW].reshape(N, Cout, H, W)


def _reference(x_nchw, weight_oihw, bias, gamma, beta, run_mean, run_var, eps=1e-5):
    y = jax.lax.conv_general_dilated(
        x_nchw, weight_oihw, window_strides=(1, 1), padding=((1, 1), (1, 1)),
        dimension_numbers=("NCHW", "OIHW", "NCHW"))
    y = y + bias[None, :, None, None]
    y = (y - run_mean[None, :, None, None]) / jnp.sqrt(run_var[None, :, None, None] + eps)
    y = y * gamma[None, :, None, None] + beta[None, :, None, None]
    return jnp.maximum(y, 0.0)


if __name__ == "__main__":
    key = jax.random.PRNGKey(0)
    k_x, k_w, k_b, k_g, k_bt, k_m, k_v = jax.random.split(key, 7)

    N, Cin, H, W = 2, 4, 16, 16
    Cout = 8

    x = jax.random.normal(k_x, (N, Cin, H, W), dtype=jnp.float32)
    weight = jax.random.normal(k_w, (Cout, Cin, 3, 3), dtype=jnp.float32) * 0.1
    bias = jax.random.normal(k_b, (Cout,), dtype=jnp.float32) * 0.1
    gamma = 1.0 + 0.1 * jax.random.normal(k_g, (Cout,), dtype=jnp.float32)
    beta = 0.1 * jax.random.normal(k_bt, (Cout,), dtype=jnp.float32)
    run_mean = 0.1 * jax.random.normal(k_m, (Cout,), dtype=jnp.float32)
    run_var = jnp.abs(1.0 + 0.1 * jax.random.normal(k_v, (Cout,), dtype=jnp.float32))

    out = single_conv_forward(x, weight, bias, gamma, beta, run_mean, run_var)
    out = jax.block_until_ready(out)

    ref = _reference(x, weight, bias, gamma, beta, run_mean, run_var)
    assert out.shape == (N, Cout, H, W)
    assert jnp.allclose(out, ref, atol=1e-4, rtol=1e-4), "mismatch vs reference"

    print("KERNEL_OK")
</pallas_src>

<mosaic_0001>
module attributes {stable_mosaic.version = 11 : i64} {
  func.func @_single_conv_kernel(%arg0: i32, %arg1: i32, %arg2: i32, %arg3: memref<2x4x256xf32, #tpu.memory_space<vmem>>, %arg4: memref<9x8x4xf32, #tpu.memory_space<vmem>>, %arg5: memref<8x1xf32, #tpu.memory_space<vmem>>, %arg6: memref<2x8x256xf32, #tpu.memory_space<vmem>>) attributes {dimension_semantics = [#tpu.dimension_semantics<parallel>, #tpu.dimension_semantics<parallel>, #tpu.dimension_semantics<arbitrary>], iteration_bounds = array<i64: 1, 1, 1>, scalar_prefetch = 0 : i64, scratch_operands = 0 : i64, tpu.core_type = #tpu.core_type<tc>, window_params = [{transform_indices = @transform_0, window_bounds = array<i64: 2, 4, 256>}, {transform_indices = @transform_1, window_bounds = array<i64: 9, 8, 4>}, {transform_indices = @transform_2, window_bounds = array<i64: 8, 1>}, {transform_indices = @transform_3, window_bounds = array<i64: 2, 8, 256>}]} {
    %0 = tpu.iota {dimensions = array<i32: 1>} : vector<1x256xi32>
    %c16_i32 = arith.constant 16 : i32
    %1 = vector.broadcast %c16_i32 : i32 to vector<1x256xi32>
    %2 = arith.cmpi sge, %0, %1 : vector<1x256xi32>
    %c240_i32 = arith.constant 240 : i32
    %3 = vector.broadcast %c240_i32 : i32 to vector<1x256xi32>
    %4 = arith.cmpi slt, %0, %3 : vector<1x256xi32>
    %c15_i32 = arith.constant 15 : i32
    %5 = vector.broadcast %c15_i32 : i32 to vector<1x256xi32>
    %6 = arith.andi %0, %5 : vector<1x256xi32>
    %c1_i32 = arith.constant 1 : i32
    %7 = vector.broadcast %c1_i32 : i32 to vector<1x256xi32>
    %8 = arith.cmpi sge, %6, %7 : vector<1x256xi32>
    %c15_i32_0 = arith.constant 15 : i32
    %9 = vector.broadcast %c15_i32_0 : i32 to vector<1x256xi32>
    %10 = arith.cmpi slt, %6, %9 : vector<1x256xi32>
    %11 = arith.andi %2, %8 : vector<1x256xi1>
    %12 = arith.andi %2, %10 : vector<1x256xi1>
    %13 = arith.andi %4, %8 : vector<1x256xi1>
    %14 = arith.andi %4, %10 : vector<1x256xi1>
    %c0 = arith.constant 0 : index
    %c0_1 = arith.constant 0 : index
    %15 = vector.load %arg5[%c0, %c0_1] : memref<8x1xf32, #tpu.memory_space<vmem>>, vector<8x1xf32>
    %c0_2 = arith.constant 0 : index
    %c0_3 = arith.constant 0 : index
    %c0_4 = arith.constant 0 : index
    %16 = vector.load %arg3[%c0_2, %c0_3, %c0_4] : memref<2x4x256xf32, #tpu.memory_space<vmem>>, vector<1x4x256xf32>
    %17 = vector.shape_cast %16 : vector<1x4x256xf32> to vector<4x256xf32>
    %cst = arith.constant 0.000000e+00 : f32
    %18 = vector.broadcast %cst : f32 to vector<8x256xf32>
    %c17_i32 = arith.constant 17 : i32
    %19 = tpu.dynamic_rotate %17 by %c17_i32 dim 1 : vector<4x256xf32>, i32 -> vector<4x256xf32>
    %cst_5 = arith.constant 0.000000e+00 : f32
    %20 = vector.shape_cast %11 : vector<1x256xi1> to vector<1x256xi1>
    %21 = vector.broadcast %20 : vector<1x256xi1> to vector<4x256xi1>
    %22 = vector.broadcast %cst_5 : f32 to vector<4x256xf32>
    %23 = arith.select %21, %19, %22 : vector<4x256xi1>, vector<4x256xf32>
    %c0_6 = arith.constant 0 : index
    %c0_7 = arith.constant 0 : index
    %c0_8 = arith.constant 0 : index
    %24 = vector.load %arg4[%c0_6, %c0_7, %c0_8] : memref<9x8x4xf32, #tpu.memory_space<vmem>>, vector<1x8x4xf32>
    %25 = vector.shape_cast %24 : vector<1x8x4xf32> to vector<8x4xf32>
    %cst_9 = arith.constant dense<0.000000e+00> : vector<8x256xf32>
    %26 = tpu.matmul %25, %23, %cst_9 {dimension_numbers = #tpu.dot_dimension_numbers<[1], [0], [0], [1], [0, 0, 1, 1], [], []>} : vector<8x4xf32>, vector<4x256xf32>, vector<8x256xf32> -> vector<8x256xf32>
    %27 = arith.addf %18, %26 : vector<8x256xf32>
    %c16_i32_10 = arith.constant 16 : i32
    %28 = tpu.dynamic_rotate %17 by %c16_i32_10 dim 1 : vector<4x256xf32>, i32 -> vector<4x256xf32>
    %cst_11 = arith.constant 0.000000e+00 : f32
    %29 = vector.shape_cast %2 : vector<1x256xi1> to vector<1x256xi1>
    %30 = vector.broadcast %29 : vector<1x256xi1> to vector<4x256xi1>
    %31 = vector.broadcast %cst_11 : f32 to vector<4x256xf32>
    %32 = arith.select %30, %28, %31 : vector<4x256xi1>, vector<4x256xf32>
    %c1 = arith.constant 1 : index
    %c0_12 = arith.constant 0 : index
    %c0_13 = arith.constant 0 : index
    %33 = vector.load %arg4[%c1, %c0_12, %c0_13] : memref<9x8x4xf32, #tpu.memory_space<vmem>>, vector<1x8x4xf32>
    %34 = vector.shape_cast %33 : vector<1x8x4xf32> to vector<8x4xf32>
    %cst_14 = arith.constant dense<0.000000e+00> : vector<8x256xf32>
    %35 = tpu.matmul %34, %32, %cst_14 {dimension_numbers = #tpu.dot_dimension_numbers<[1], [0], [0], [1], [0, 0, 1, 1], [], []>} : vector<8x4xf32>, vector<4x256xf32>, vector<8x256xf32> -> vector<8x256xf32>
    %36 = arith.addf %27, %35 : vector<8x256xf32>
    %c15_i32_15 = arith.constant 15 : i32
    %37 = tpu.dynamic_rotate %17 by %c15_i32_15 dim 1 : vector<4x256xf32>, i32 -> vector<4x256xf32>
    %cst_16 = arith.constant 0.000000e+00 : f32
    %38 = vector.shape_cast %12 : vector<1x256xi1> to vector<1x256xi1>
    %39 = vector.broadcast %38 : vector<1x256xi1> to vector<4x256xi1>
    %40 = vector.broadcast %cst_16 : f32 to vector<4x256xf32>
    %41 = arith.select %39, %37, %40 : vector<4x256xi1>, vector<4x256xf32>
    %c2 = arith.constant 2 : index
    %c0_17 = arith.constant 0 : index
    %c0_18 = arith.constant 0 : index
    %42 = vector.load %arg4[%c2, %c0_17, %c0_18] : memref<9x8x4xf32, #tpu.memory_space<vmem>>, vector<1x8x4xf32>
    %43 = vector.shape_cast %42 : vector<1x8x4xf32> to vector<8x4xf32>
    %cst_19 = arith.constant dense<0.000000e+00> : vector<8x256xf32>
    %44 = tpu.matmul %43, %41, %cst_19 {dimension_numbers = #tpu.dot_dimension_numbers<[1], [0], [0], [1], [0, 0, 1, 1], [], []>} : vector<8x4xf32>, vector<4x256xf32>, vector<8x256xf32> -> vector<8x256xf32>
    %45 = arith.addf %36, %44 : vector<8x256xf32>
    %c1_i32_20 = arith.constant 1 : i32
    %46 = tpu.dynamic_rotate %17 by %c1_i32_20 dim 1 : vector<4x256xf32>, i32 -> vector<4x256xf32>
    %cst_21 = arith.constant 0.000000e+00 : f32
    %47 = vector.shape_cast %8 : vector<1x256xi1> to vector<1x256xi1>
    %48 = vector.broadcast %47 : vector<1x256xi1> to vector<4x256xi1>
    %49 = vector.broadcast %cst_21 : f32 to vector<4x256xf32>
    %50 = arith.select %48, %46, %49 : vector<4x256xi1>, vector<4x256xf32>
    %c3 = arith.constant 3 : index
    %c0_22 = arith.constant 0 : index
    %c0_23 = arith.constant 0 : index
    %51 = vector.load %arg4[%c3, %c0_22, %c0_23] : memref<9x8x4xf32, #tpu.memory_space<vmem>>, vector<1x8x4xf32>
    %52 = vector.shape_cast %51 : vector<1x8x4xf32> to vector<8x4xf32>
    %cst_24 = arith.constant dense<0.000000e+00> : vector<8x256xf32>
    %53 = tpu.matmul %52, %50, %cst_24 {dimension_numbers = #tpu.dot_dimension_numbers<[1], [0], [0], [1], [0, 0, 1, 1], [], []>} : vector<8x4xf32>, vector<4x256xf32>, vector<8x256xf32> -> vector<8x256xf32>
    %54 = arith.addf %45, %53 : vector<8x256xf32>
    %c4 = arith.constant 4 : index
    %c0_25 = arith.constant 0 : index
    %c0_26 = arith.constant 0 : index
    %55 = vector.load %arg4[%c4, %c0_25, %c0_26] : memref<9x8x4xf32, #tpu.memory_space<vmem>>, vector<1x8x4xf32>
    %56 = vector.shape_cast %55 : vector<1x8x4xf32> to vector<8x4xf32>
    %cst_27 = arith.constant dense<0.000000e+00> : vector<8x256xf32>
    %57 = tpu.matmul %56, %17, %cst_27 {dimension_numbers = #tpu.dot_dimension_numbers<[1], [0], [0], [1], [0, 0, 1, 1], [], []>} : vector<8x4xf32>, vector<4x256xf32>, vector<8x256xf32> -> vector<8x256xf32>
    %58 = arith.addf %54, %57 : vector<8x256xf32>
    %c255_i32 = arith.constant 255 : i32
    %59 = tpu.dynamic_rotate %17 by %c255_i32 dim 1 : vector<4x256xf32>, i32 -> vector<4x256xf32>
    %cst_28 = arith.constant 0.000000e+00 : f32
    %60 = vector.shape_cast %10 : vector<1x256xi1> to vector<1x256xi1>
    %61 = vector.broadcast %60 : vector<1x256xi1> to vector<4x256xi1>
    %62 = vector.broadcast %cst_28 : f32 to vector<4x256xf32>
    %63 = arith.select %61, %59, %62 : vector<4x256xi1>, vector<4x256xf32>
    %c5 = arith.constant 5 : index
    %c0_29 = arith.constant 0 : index
    %c0_30 = arith.constant 0 : index
    %64 = vector.load %arg4[%c5, %c0_29, %c0_30] : memref<9x8x4xf32, #tpu.memory_space<vmem>>, vector<1x8x4xf32>
    %65 = vector.shape_cast %64 : vector<1x8x4xf32> to vector<8x4xf32>
    %cst_31 = arith.constant dense<0.000000e+00> : vector<8x256xf32>
    %66 = tpu.matmul %65, %63, %cst_31 {dimension_numbers = #tpu.dot_dimension_numbers<[1], [0], [0], [1], [0, 0, 1, 1], [], []>} : vector<8x4xf32>, vector<4x256xf32>, vector<8x256xf32> -> vector<8x256xf32>
    %67 = arith.addf %58, %66 : vector<8x256xf32>
    %c241_i32 = arith.constant 241 : i32
    %68 = tpu.dynamic_rotate %17 by %c241_i32 dim 1 : vector<4x256xf32>, i32 -> vector<4x256xf32>
    %cst_32 = arith.constant 0.000000e+00 : f32
    %69 = vector.shape_cast %13 : vector<1x256xi1> to vector<1x256xi1>
    %70 = vector.broadcast %69 : vector<1x256xi1> to vector<4x256xi1>
    %71 = vector.broadcast %cst_32 : f32 to vector<4x256xf32>
    %72 = arith.select %70, %68, %71 : vector<4x256xi1>, vector<4x256xf32>
    %c6 = arith.constant 6 : index
    %c0_33 = arith.constant 0 : index
    %c0_34 = arith.constant 0 : index
    %73 = vector.load %arg4[%c6, %c0_33, %c0_34] : memref<9x8x4xf32, #tpu.memory_space<vmem>>, vector<1x8x4xf32>
    %74 = vector.shape_cast %73 : vector<1x8x4xf32> to vector<8x4xf32>
    %cst_35 = arith.constant dense<0.000000e+00> : vector<8x256xf32>
    %75 = tpu.matmul %74, %72, %cst_35 {dimension_numbers = #tpu.dot_dimension_numbers<[1], [0], [0], [1], [0, 0, 1, 1], [], []>} : vector<8x4xf32>, vector<4x256xf32>, vector<8x256xf32> -> vector<8x256xf32>
    %76 = arith.addf %67, %75 : vector<8x256xf32>
    %c240_i32_36 = arith.constant 240 : i32
    %77 = tpu.dynamic_rotate %17 by %c240_i32_36 dim 1 : vector<4x256xf32>, i32 -> vector<4x256xf32>
    %cst_37 = arith.constant 0.000000e+00 : f32
    %78 = vector.shape_cast %4 : vector<1x256xi1> to vector<1x256xi1>
    %79 = vector.broadcast %78 : vector<1x256xi1> to vector<4x256xi1>
    %80 = vector.broadcast %cst_37 : f32 to vector<4x256xf32>
    %81 = arith.select %79, %77, %80 : vector<4x256xi1>, vector<4x256xf32>
    %c7 = arith.constant 7 : index
    %c0_38 = arith.constant 0 : index
    %c0_39 = arith.constant 0 : index
    %82 = vector.load %arg4[%c7, %c0_38, %c0_39] : memref<9x8x4xf32, #tpu.memory_space<vmem>>, vector<1x8x4xf32>
    %83 = vector.shape_cast %82 : vector<1x8x4xf32> to vector<8x4xf32>
    %cst_40 = arith.constant dense<0.000000e+00> : vector<8x256xf32>
    %84 = tpu.matmul %83, %81, %cst_40 {dimension_numbers = #tpu.dot_dimension_numbers<[1], [0], [0], [1], [0, 0, 1, 1], [], []>} : vector<8x4xf32>, vector<4x256xf32>, vector<8x256xf32> -> vector<8x256xf32>
    %85 = arith.addf %76, %84 : vector<8x256xf32>
    %c239_i32 = arith.constant 239 : i32
    %86 = tpu.dynamic_rotate %17 by %c239_i32 dim 1 : vector<4x256xf32>, i32 -> vector<4x256xf32>
    %cst_41 = arith.constant 0.000000e+00 : f32
    %87 = vector.shape_cast %14 : vector<1x256xi1> to vector<1x256xi1>
    %88 = vector.broadcast %87 : vector<1x256xi1> to vector<4x256xi1>
    %89 = vector.broadcast %cst_41 : f32 to vector<4x256xf32>
    %90 = arith.select %88, %86, %89 : vector<4x256xi1>, vector<4x256xf32>
    %c8 = arith.constant 8 : index
    %c0_42 = arith.constant 0 : index
    %c0_43 = arith.constant 0 : index
    %91 = vector.load %arg4[%c8, %c0_42, %c0_43] : memref<9x8x4xf32, #tpu.memory_space<vmem>>, vector<1x8x4xf32>
    %92 = vector.shape_cast %91 : vector<1x8x4xf32> to vector<8x4xf32>
    %cst_44 = arith.constant dense<0.000000e+00> : vector<8x256xf32>
    %93 = tpu.matmul %92, %90, %cst_44 {dimension_numbers = #tpu.dot_dimension_numbers<[1], [0], [0], [1], [0, 0, 1, 1], [], []>} : vector<8x4xf32>, vector<4x256xf32>, vector<8x256xf32> -> vector<8x256xf32>
    %94 = arith.addf %85, %93 : vector<8x256xf32>
    %95 = vector.broadcast %15 : vector<8x1xf32> to vector<8x256xf32>
    %96 = arith.addf %94, %95 : vector<8x256xf32>
    %cst_45 = arith.constant 0.000000e+00 : f32
    %97 = vector.broadcast %cst_45 : f32 to vector<8x256xf32>
    %98 = arith.maximumf %96, %97 : vector<8x256xf32>
    %c0_46 = arith.constant 0 : index
    %c0_47 = arith.constant 0 : index
    %c0_48 = arith.constant 0 : index
    %99 = vector.load %arg6[%c0_46, %c0_47, %c0_48] : memref<2x8x256xf32, #tpu.memory_space<vmem>>, vector<1x8x256xf32>
    %100 = vector.shape_cast %99 : vector<1x8x256xf32> to vector<8x256xf32>
    %101 = vector.shape_cast %98 : vector<8x256xf32> to vector<1x8x256xf32>
    tpu.vector_store %arg6[%c0_46, %c0_47, %c0_48], %101 {strides = array<i32>} : memref<2x8x256xf32, #tpu.memory_space<vmem>>, vector<1x8x256xf32>,
    %c1_49 = arith.constant 1 : index
    %c0_50 = arith.constant 0 : index
    %c0_51 = arith.constant 0 : index
    %102 = vector.load %arg3[%c1_49, %c0_50, %c0_51] : memref<2x4x256xf32, #tpu.memory_space<vmem>>, vector<1x4x256xf32>
    %103 = vector.shape_cast %102 : vector<1x4x256xf32> to vector<4x256xf32>
    %cst_52 = arith.constant 0.000000e+00 : f32
    %104 = vector.broadcast %cst_52 : f32 to vector<8x256xf32>
    %c17_i32_53 = arith.constant 17 : i32
    %105 = tpu.dynamic_rotate %103 by %c17_i32_53 dim 1 : vector<4x256xf32>, i32 -> vector<4x256xf32>
    %cst_54 = arith.constant 0.000000e+00 : f32
    %106 = vector.shape_cast %11 : vector<1x256xi1> to vector<1x256xi1>
    %107 = vector.broadcast %106 : vector<1x256xi1> to vector<4x256xi1>
    %108 = vector.broadcast %cst_54 : f32 to vector<4x256xf32>
    %109 = arith.select %107, %105, %108 : vector<4x256xi1>, vector<4x256xf32>
    %c0_55 = arith.constant 0 : index
    %c0_56 = arith.constant 0 : index
    %c0_57 = arith.constant 0 : index
    %110 = vector.load %arg4[%c0_55, %c0_56, %c0_57] : memref<9x8x4xf32, #tpu.memory_space<vmem>>, vector<1x8x4xf32>
    %111 = vector.shape_cast %110 : vector<1x8x4xf32> to vector<8x4xf32>
    %cst_58 = arith.constant dense<0.000000e+00> : vector<8x256xf32>
    %112 = tpu.matmul %111, %109, %cst_58 {dimension_numbers = #tpu.dot_dimension_numbers<[1], [0], [0], [1], [0, 0, 1, 1], [], []>} : vector<8x4xf32>, vector<4x256xf32>, vector<8x256xf32> -> vector<8x256xf32>
    %113 = arith.addf %104, %112 : vector<8x256xf32>
    %c16_i32_59 = arith.constant 16 : i32
    %114 = tpu.dynamic_rotate %103 by %c16_i32_59 dim 1 : vector<4x256xf32>, i32 -> vector<4x256xf32>
    %cst_60 = arith.constant 0.000000e+00 : f32
    %115 = vector.shape_cast %2 : vector<1x256xi1> to vector<1x256xi1>
    %116 = vector.broadcast %115 : vector<1x256xi1> to vector<4x256xi1>
    %117 = vector.broadcast %cst_60 : f32 to vector<4x256xf32>
    %118 = arith.select %116, %114, %117 : vector<4x256xi1>, vector<4x256xf32>
    %c1_61 = arith.constant 1 : index
    %c0_62 = arith.constant 0 : index
    %c0_63 = arith.constant 0 : index
    %119 = vector.load %arg4[%c1_61, %c0_62, %c0_63] : memref<9x8x4xf32, #tpu.memory_space<vmem>>, vector<1x8x4xf32>
    %120 = vector.shape_cast %119 : vector<1x8x4xf32> to vector<8x4xf32>
    %cst_64 = arith.constant dense<0.000000e+00> : vector<8x256xf32>
    %121 = tpu.matmul %120, %118, %cst_64 {dimension_numbers = #tpu.dot_dimension_numbers<[1], [0], [0], [1], [0, 0, 1, 1], [], []>} : vector<8x4xf32>, vector<4x256xf32>, vector<8x256xf32> -> vector<8x256xf32>
    %122 = arith.addf %113, %121 : vector<8x256xf32>
    %c15_i32_65 = arith.constant 15 : i32
    %123 = tpu.dynamic_rotate %103 by %c15_i32_65 dim 1 : vector<4x256xf32>, i32 -> vector<4x256xf32>
    %cst_66 = arith.constant 0.000000e+00 : f32
    %124 = vector.shape_cast %12 : vector<1x256xi1> to vector<1x256xi1>
    %125 = vector.broadcast %124 : vector<1x256xi1> to vector<4x256xi1>
    %126 = vector.broadcast %cst_66 : f32 to vector<4x256xf32>
    %127 = arith.select %125, %123, %126 : vector<4x256xi1>, vector<4x256xf32>
    %c2_67 = arith.constant 2 : index
    %c0_68 = arith.constant 0 : index
    %c0_69 = arith.constant 0 : index
    %128 = vector.load %arg4[%c2_67, %c0_68, %c0_69] : memref<9x8x4xf32, #tpu.memory_space<vmem>>, vector<1x8x4xf32>
    %129 = vector.shape_cast %128 : vector<1x8x4xf32> to vector<8x4xf32>
    %cst_70 = arith.constant dense<0.000000e+00> : vector<8x256xf32>
    %130 = tpu.matmul %129, %127, %cst_70 {dimension_numbers = #tpu.dot_dimension_numbers<[1], [0], [0], [1], [0, 0, 1, 1], [], []>} : vector<8x4xf32>, vector<4x256xf32>, vector<8x256xf32> -> vector<8x256xf32>
    %131 = arith.addf %122, %130 : vector<8x256xf32>
    %c1_i32_71 = arith.constant 1 : i32
    %132 = tpu.dynamic_rotate %103 by %c1_i32_71 dim 1 : vector<4x256xf32>, i32 -> vector<4x256xf32>
    %cst_72 = arith.constant 0.000000e+00 : f32
    %133 = vector.shape_cast %8 : vector<1x256xi1> to vector<1x256xi1>
    %134 = vector.broadcast %133 : vector<1x256xi1> to vector<4x256xi1>
    %135 = vector.broadcast %cst_72 : f32 to vector<4x256xf32>
    %136 = arith.select %134, %132, %135 : vector<4x256xi1>, vector<4x256xf32>
    %c3_73 = arith.constant 3 : index
    %c0_74 = arith.constant 0 : index
    %c0_75 = arith.constant 0 : index
    %137 = vector.load %arg4[%c3_73, %c0_74, %c0_75] : memref<9x8x4xf32, #tpu.memory_space<vmem>>, vector<1x8x4xf32>
    %138 = vector.shape_cast %137 : vector<1x8x4xf32> to vector<8x4xf32>
    %cst_76 = arith.constant dense<0.000000e+00> : vector<8x256xf32>
    %139 = tpu.matmul %138, %136, %cst_76 {dimension_numbers = #tpu.dot_dimension_numbers<[1], [0], [0], [1], [0, 0, 1, 1], [], []>} : vector<8x4xf32>, vector<4x256xf32>, vector<8x256xf32> -> vector<8x256xf32>
    %140 = arith.addf %131, %139 : vector<8x256xf32>
    %c4_77 = arith.constant 4 : index
    %c0_78 = arith.constant 0 : index
    %c0_79 = arith.constant 0 : index
    %141 = vector.load %arg4[%c4_77, %c0_78, %c0_79] : memref<9x8x4xf32, #tpu.memory_space<vmem>>, vector<1x8x4xf32>
    %142 = vector.shape_cast %141 : vector<1x8x4xf32> to vector<8x4xf32>
    %cst_80 = arith.constant dense<0.000000e+00> : vector<8x256xf32>
    %143 = tpu.matmul %142, %103, %cst_80 {dimension_numbers = #tpu.dot_dimension_numbers<[1], [0], [0], [1], [0, 0, 1, 1], [], []>} : vector<8x4xf32>, vector<4x256xf32>, vector<8x256xf32> -> vector<8x256xf32>
    %144 = arith.addf %140, %143 : vector<8x256xf32>
    %c255_i32_81 = arith.constant 255 : i32
    %145 = tpu.dynamic_rotate %103 by %c255_i32_81 dim 1 : vector<4x256xf32>, i32 -> vector<4x256xf32>
    %cst_82 = arith.constant 0.000000e+00 : f32
    %146 = vector.shape_cast %10 : vector<1x256xi1> to vector<1x256xi1>
    %147 = vector.broadcast %146 : vector<1x256xi1> to vector<4x256xi1>
    %148 = vector.broadcast %cst_82 : f32 to vector<4x256xf32>
    %149 = arith.select %147, %145, %148 : vector<4x256xi1>, vector<4x256xf32>
    %c5_83 = arith.constant 5 : index
    %c0_84 = arith.constant 0 : index
    %c0_85 = arith.constant 0 : index
    %150 = vector.load %arg4[%c5_83, %c0_84, %c0_85] : memref<9x8x4xf32, #tpu.memory_space<vmem>>, vector<1x8x4xf32>
    %151 = vector.shape_cast %150 : vector<1x8x4xf32> to vector<8x4xf32>
    %cst_86 = arith.constant dense<0.000000e+00> : vector<8x256xf32>
    %152 = tpu.matmul %151, %149, %cst_86 {dimension_numbers = #tpu.dot_dimension_numbers<[1], [0], [0], [1], [0, 0, 1, 1], [], []>} : vector<8x4xf32>, vector<4x256xf32>, vector<8x256xf32> -> vector<8x256xf32>
    %153 = arith.addf %144, %152 : vector<8x256xf32>
    %c241_i32_87 = arith.constant 241 : i32
    %154 = tpu.dynamic_rotate %103 by %c241_i32_87 dim 1 : vector<4x256xf32>, i32 -> vector<4x256xf32>
    %cst_88 = arith.constant 0.000000e+00 : f32
    %155 = vector.shape_cast %13 : vector<1x256xi1> to vector<1x256xi1>
    %156 = vector.broadcast %155 : vector<1x256xi1> to vector<4x256xi1>
    %157 = vector.broadcast %cst_88 : f32 to vector<4x256xf32>
    %158 = arith.select %156, %154, %157 : vector<4x256xi1>, vector<4x256xf32>
    %c6_89 = arith.constant 6 : index
    %c0_90 = arith.constant 0 : index
    %c0_91 = arith.constant 0 : index
    %159 = vector.load %arg4[%c6_89, %c0_90, %c0_91] : memref<9x8x4xf32, #tpu.memory_space<vmem>>, vector<1x8x4xf32>
    %160 = vector.shape_cast %159 : vector<1x8x4xf32> to vector<8x4xf32>
    %cst_92 = arith.constant dense<0.000000e+00> : vector<8x256xf32>
    %161 = tpu.matmul %160, %158, %cst_92 {dimension_numbers = #tpu.dot_dimension_numbers<[1], [0], [0], [1], [0, 0, 1, 1], [], []>} : vector<8x4xf32>, vector<4x256xf32>, vector<8x256xf32> -> vector<8x256xf32>
    %162 = arith.addf %153, %161 : vector<8x256xf32>
    %c240_i32_93 = arith.constant 240 : i32
    %163 = tpu.dynamic_rotate %103 by %c240_i32_93 dim 1 : vector<4x256xf32>, i32 -> vector<4x256xf32>
    %cst_94 = arith.constant 0.000000e+00 : f32
    %164 = vector.shape_cast %4 : vector<1x256xi1> to vector<1x256xi1>
    %165 = vector.broadcast %164 : vector<1x256xi1> to vector<4x256xi1>
    %166 = vector.broadcast %cst_94 : f32 to vector<4x256xf32>
    %167 = arith.select %165, %163, %166 : vector<4x256xi1>, vector<4x256xf32>
    %c7_95 = arith.constant 7 : index
    %c0_96 = arith.constant 0 : index
    %c0_97 = arith.constant 0 : index
    %168 = vector.load %arg4[%c7_95, %c0_96, %c0_97] : memref<9x8x4xf32, #tpu.memory_space<vmem>>, vector<1x8x4xf32>
    %169 = vector.shape_cast %168 : vector<1x8x4xf32> to vector<8x4xf32>
    %cst_98 = arith.constant dense<0.000000e+00> : vector<8x256xf32>
    %170 = tpu.matmul %169, %167, %cst_98 {dimension_numbers = #tpu.dot_dimension_numbers<[1], [0], [0], [1], [0, 0, 1, 1], [], []>} : vector<8x4xf32>, vector<4x256xf32>, vector<8x256xf32> -> vector<8x256xf32>
    %171 = arith.addf %162, %170 : vector<8x256xf32>
    %c239_i32_99 = arith.constant 239 : i32
    %172 = tpu.dynamic_rotate %103 by %c239_i32_99 dim 1 : vector<4x256xf32>, i32 -> vector<4x256xf32>
    %cst_100 = arith.constant 0.000000e+00 : f32
    %173 = vector.shape_cast %14 : vector<1x256xi1> to vector<1x256xi1>
    %174 = vector.broadcast %173 : vector<1x256xi1> to vector<4x256xi1>
    %175 = vector.broadcast %cst_100 : f32 to vector<4x256xf32>
    %176 = arith.select %174, %172, %175 : vector<4x256xi1>, vector<4x256xf32>
    %c8_101 = arith.constant 8 : index
    %c0_102 = arith.constant 0 : index
    %c0_103 = arith.constant 0 : index
    %177 = vector.load %arg4[%c8_101, %c0_102, %c0_103] : memref<9x8x4xf32, #tpu.memory_space<vmem>>, vector<1x8x4xf32>
    %178 = vector.shape_cast %177 : vector<1x8x4xf32> to vector<8x4xf32>
    %cst_104 = arith.constant dense<0.000000e+00> : vector<8x256xf32>
    %179 = tpu.matmul %178, %176, %cst_104 {dimension_numbers = #tpu.dot_dimension_numbers<[1], [0], [0], [1], [0, 0, 1, 1], [], []>} : vector<8x4xf32>, vector<4x256xf32>, vector<8x256xf32> -> vector<8x256xf32>
    %180 = arith.addf %171, %179 : vector<8x256xf32>
    %181 = vector.broadcast %15 : vector<8x1xf32> to vector<8x256xf32>
    %182 = arith.addf %180, %181 : vector<8x256xf32>
    %cst_105 = arith.constant 0.000000e+00 : f32
    %183 = vector.broadcast %cst_105 : f32 to vector<8x256xf32>
    %184 = arith.maximumf %182, %183 : vector<8x256xf32>
    %c1_106 = arith.constant 1 : index
    %c0_107 = arith.constant 0 : index
    %c0_108 = arith.constant 0 : index
    %185 = vector.load %arg6[%c1_106, %c0_107, %c0_108] : memref<2x8x256xf32, #tpu.memory_space<vmem>>, vector<1x8x256xf32>
    %186 = vector.shape_cast %185 : vector<1x8x256xf32> to vector<8x256xf32>
    %187 = vector.shape_cast %184 : vector<8x256xf32> to vector<1x8x256xf32>
    tpu.vector_store %arg6[%c1_106, %c0_107, %c0_108], %187 {strides = array<i32>} : memref<2x8x256xf32, #tpu.memory_space<vmem>>, vector<1x8x256xf32>,
    return
  }
  func.func @transform_0(%arg0: i32, %arg1: i32, %arg2: i32) -> (i32, i32, i32) {
    %c0_i32 = arith.constant 0 : i32
    %c0_i32_0 = arith.constant 0 : i32
    return %arg0, %arg2, %c0_i32 : i32, i32, i32
  }
  func.func @transform_1(%arg0: i32, %arg1: i32, %arg2: i32) -> (i32, i32, i32) {
    %c0_i32 = arith.constant 0 : i32
    %c0_i32_0 = arith.constant 0 : i32
    return %c0_i32, %arg1, %arg2 : i32, i32, i32
  }
  func.func @transform_2(%arg0: i32, %arg1: i32, %arg2: i32) -> (i32, i32) {
    %c0_i32 = arith.constant 0 : i32
    %c0_i32_0 = arith.constant 0 : i32
    return %arg1, %c0_i32 : i32, i32
  }
  func.func @transform_3(%arg0: i32, %arg1: i32, %arg2: i32) -> (i32, i32, i32) {
    %c0_i32 = arith.constant 0 : i32
    %c0_i32_0 = arith.constant 0 : i32
    return %arg0, %arg1, %c0_i32 : i32, i32, i32
  }
}

</mosaic_0001>

<llo_original>
// kernel: tpu_custom_call.1
$region0: #{tpu_custom_call.1}
  #allocation0 [shape = 'u32[]', space=smem, size = 0x4, offset = 0x4, fixed_abs, tag = 'smem constant byte address 0x4 - core index']
  #allocation1 [shape = 'u32[144,128]{1,0:T(1,128)}', space=vmem, size = 0x12000, scoped, tag = 'internal scratch']
  %s0 = inlined_call_operand.vmem [shape: f32[2,4,256], index: 0, kind: input, shape index: {}]
  %s1 = inlined_call_operand.vmem [shape: f32[9,8,4], index: 1, kind: input, shape index: {}]
  %s2 = inlined_call_operand.vmem [shape: f32[8,1], index: 2, kind: input, shape index: {}]
  %s3 = inlined_call_operand.hbm [shape: f32[2,8,256], index: 3, kind: output, shape index: {}]
  %s4 = sld [smem:[#allocation0]]
  $region22: #{tpu_custom_call.1} parent=0
    _
  %s6 = ssub.s32 1, %s4
  %s7 = scalar_select 0, %s6, %s4
  $region1: #{tpu_custom_call.1} parent=0
    #allocation2 [shape = 'u8[16384]{0}', space=vmem, size = 0x4000, scoped, tag = 'output window, operand 0, single buffered']
    #allocation3 [shape = 's32[1]{0}', space=sflag, size = 0x4, scoped, tag = 'scoped memory for tpu_custom_call.1']
    %8 = vsyncpa [#allocation3], 0
    // Predicated region
    $region2: #{tpu_custom_call.1} parent=1 // pred_check
      _
    $region3: #{tpu_custom_call.1} parent=1 // pred_check_branch
      %10 = sbr.rel (0) target = $region5
    $region4: #{tpu_custom_call.1} parent=1 // pred_region
      _
    $region5: #{tpu_custom_call.1} parent=1 // pred_fallthru
      _
    // Predicated region
    $region6: #{tpu_custom_call.1} parent=1 // pred_check
      _
    $region7: #{tpu_custom_call.1} parent=1 // pred_check_branch
      %12 = sbr.rel (0) target = $region9
    $region8: #{tpu_custom_call.1} parent=1 // pred_region
      _
    $region9: #{tpu_custom_call.1} parent=1 // pred_fallthru
      _
    // Predicated region
    $region10: #{tpu_custom_call.1} parent=1 // pred_check
      _
    $region11: #{tpu_custom_call.1} parent=1 // pred_check_branch
      %14 = sbr.rel (0) target = $region13
    $region12: #{tpu_custom_call.1} parent=1 // pred_region
      _
    $region13: #{tpu_custom_call.1} parent=1 // pred_fallthru
      _
    %v15 = vlaneseq
    %v16 = vand.u32 %v15, 127
    %v17 = vadd.s32 %v16, 128
    %vm18 = vcmp.ge.s32.totalorder %v16, 16
    %vm19 = vcmp.ge.s32.totalorder %v17, 16
    %vm20 = vcmp.lt.s32.totalorder %v16, 240
    %vm21 = vcmp.lt.s32.totalorder %v17, 240
    %v22 = vand.u32 %v16, 15
    %v23 = vand.u32 %v17, 15
    %vm24 = vcmp.ge.s32.totalorder %v22, 1
    %vm25 = vcmp.ge.s32.totalorder %v23, 1
    %vm26 = vcmp.lt.s32.totalorder %v22, 15
    %vm27 = vcmp.lt.s32.totalorder %v23, 15
    %vm28 = vmand %vm18, %vm24
    %vm29 = vmand %vm19, %vm25
    %vm30 = vmand %vm18, %vm26
    %vm31 = vmand %vm19, %vm27
    %vm32 = vmand %vm20, %vm24
    %vm33 = vmand %vm21, %vm25
    %vm34 = vmand %vm20, %vm26
    %vm35 = vmand %vm21, %vm27
    %v36 = vld [vmem:[%s2] sm:$0xff]
    %v37 = vld [vmem:[%s0] sm:$0xff]
    %v39 = vcombine.high %v37, %v37
    %41 = vrot.lane.b32.xlu0 %v37, 17
    %v42 = vpop.permute.xlu0 %41
    %43 = vrot.lane.b32.xlu0 %v39, 17
    %v44 = vpop.permute.xlu0 %43
    %vm45 = vcmp.lt.s32.totalorder %v16, 17
    %v46 = vsel %vm45, %v42, %v44
    %v47 = vsel %vm45, %v44, %v42
    %v48 = vsel %vm28, 1, 0
    %v49 = vsel %vm29, 1, 0
    %vm50 = vcmp.eq.s32.totalorder %v48, 1
    %vm51 = vcmp.eq.s32.totalorder %v49, 1
    %v52 = vsel %vm50, %v47, 0.0
    %v53 = vsel %vm51, %v46, 0.0
    %v54 = vld [vmem:[%s1] sm:$0xff]
    %55 = vrot.lane.b32.xlu0 %v37, 16
    %v56 = vpop.permute.xlu0 %55
    %57 = vrot.lane.b32.xlu0 %v39, 16
    %v58 = vpop.permute.xlu0 %57
    %vm59 = vcmp.lt.s32.totalorder %v16, 16
    %v60 = vsel %vm59, %v56, %v58
    %v61 = vsel %vm59, %v58, %v56
    %v62 = vsel %vm18, 1, 0
    %v63 = vsel %vm19, 1, 0
    %vm64 = vcmp.eq.s32.totalorder %v62, 1
    %vm65 = vcmp.eq.s32.totalorder %v63, 1
    %v66 = vsel %vm64, %v61, 0.0
    %v67 = vsel %vm65, %v60, 0.0
    %s68 = scalar_lea.vmem %s1, 8
    %v69 = vld [vmem:[%s68] sm:$0xff]
    %vm70 = vcmask 31744
    %v72 = vsel %vm70, %v69, 0
    %vm74 = vcmask 1043456
    %v76 = vsel %vm74, %v66, 0
    %v79 = vsel %vm74, %v67, 0
    %81 = vmatprep.subr.mxu0 %v79
    %82 = vmatpush1.msra.mxu0 %v76
    %83 = vmatprep.subr.mxu0 0.0
    %84 = vmatpush1.msra.mxu0 0.0
    %85 = vmatprep.subr.mxu0 0.0
    %86 = vmatpush1.msra.mxu0 0.0
    %87 = vmatprep.subr.mxu0 0.0
    %88 = vmatpush1.msra.mxu0 0.0
    %89 = vmatprep.subr.mxu0 0.0
    %90 = vmatpush1.msra.mxu0 0.0
    %91 = vmatprep.subr.mxu0 0.0
    %92 = vmatpush1.msra.mxu0 0.0
    %93 = vmatprep.subr.mxu0 0.0
    %94 = vmatpush1.msra.mxu0 0.0
    %95 = vmatprep.subr.mxu0 0.0
    %96 = vmatpush1.msra.mxu0 0.0
    %97 = vmatprep.subr.mxu0 0.0
    %98 = vmatpush1.msra.mxu0 0.0
    %99 = vmatprep.subr.mxu0 0.0
    %100 = vmatpush1.msra.mxu0 0.0
    %101 = vmatprep.subr.mxu0 0.0
    %102 = vmatpush1.msra.mxu0 0.0
    %103 = vmatprep.subr.mxu0 0.0
    %104 = vmatpush1.msra.mxu0 0.0
    %105 = vmatprep.subr.mxu0 0.0
    %106 = vmatpush1.msra.mxu0 0.0
    %107 = vmatprep.subr.mxu0 0.0
    %108 = vmatpush1.msra.mxu0 0.0
    %109 = vmatprep.subr.mxu0 0.0
    %110 = vmatpush1.msra.mxu0 0.0
    %111 = vmatprep.subr.mxu0 0.0
    %112 = vmatpush1.msra.mxu0 0.0
    %113 = vmatprep.subr.mxu0 0.0
    %114 = vmatpush1.msra.mxu0 0.0
    %115 = vmatprep.subr.mxu0 0.0
    %116 = vmatpush1.msra.mxu0 0.0
    %117 = vmatprep.subr.mxu0 0.0
    %118 = vmatpush1.msra.mxu0 0.0
    %119 = vmatprep.subr.mxu0 0.0
    %120 = vmatpush1.msra.mxu0 0.0
    %121 = vmatprep.subr.mxu0 0.0
    %122 = vmatpush1.msra.mxu0 0.0
    %123 = vmatprep.subr.mxu0 0.0
    %124 = vmatpush1.msra.mxu0 0.0
    %125 = vmatprep.subr.mxu0 0.0
    %126 = vmatpush1.msra.mxu0 0.0
    %127 = vmatprep.subr.mxu0 0.0
    %128 = vmatpush1.msra.mxu0 0.0
    %129 = vmatprep.subr.mxu0 0.0
    %130 = vmatpush1.msra.mxu0 0.0
    %131 = vmatprep.subr.mxu0 0.0
    %132 = vmatpush1.msra.mxu0 0.0
    %133 = vmatprep.subr.mxu0 0.0
    %134 = vmatpush1.msra.mxu0 0.0
    %135 = vmatprep.subr.mxu0 0.0
    %136 = vmatpush1.msra.mxu0 0.0
    %137 = vmatprep.subr.mxu0 0.0
    %138 = vmatpush1.msra.mxu0 0.0
    %139 = vmatprep.subr.mxu0 0.0
    %140 = vmatpush1.msra.mxu0 0.0
    %141 = vmatprep.subr.mxu0 0.0
    %142 = vmatpush1.msra.mxu0 0.0
    %143 = vmatprep.subr.mxu0 0.0
    %144 = vmatpush1.msra.mxu0 0.0
    %145 = vmatprep.mubr.f32.mxu0 0.0
    %146 = vmatmul.mubr.f32.gmra.mrb[0].mxu0 %v72
    %v147 = vpop.f32.mrb[0].mxu0
    %v148 = vadd.f32 0.0, %v147
    %v149 = vpop.f32.mrb[0].mxu0
    %v150 = vadd.f32 0.0, %v149
    %151 = vdwg.mxu0
    %v153 = vsel %vm70, %v54, 0
    %v156 = vsel %vm74, %v52, 0
    %v159 = vsel %vm74, %v53, 0
    %161 = vmatprep.subr.mxu0 %v159
    %162 = vmatpush1.msra.mxu0 %v156
    %163 = vmatprep.subr.mxu0 0.0
    %164 = vmatpush1.msra.mxu0 0.0
    %165 = vmatprep.subr.mxu0 0.0
    %166 = vmatpush1.msra.mxu0 0.0
    %167 = vmatprep.subr.mxu0 0.0
    %168 = vmatpush1.msra.mxu0 0.0
    %169 = vmatprep.subr.mxu0 0.0
    %170 = vmatpush1.msra.mxu0 0.0
    %171 = vmatprep.subr.mxu0 0.0
    %172 = vmatpush1.msra.mxu0 0.0
    %173 = vmatprep.subr.mxu0 0.0
    %174 = vmatpush1.msra.mxu0 0.0
    %175 = vmatprep.subr.mxu0 0.0
    %176 = vmatpush1.msra.mxu0 0.0
    %177 = vmatprep.subr.mxu0 0.0
    %178 = vmatpush1.msra.mxu0 0.0
    %179 = vmatprep.subr.mxu0 0.0
    %180 = vmatpush1.msra.mxu0 0.0
    %181 = vmatprep.subr.mxu0 0.0
    %182 = vmatpush1.msra.mxu0 0.0
    %183 = vmatprep.subr.mxu0 0.0
    %184 = vmatpush1.msra.mxu0 0.0
    %185 = vmatprep.subr.mxu0 0.0
    %186 = vmatpush1.msra.mxu0 0.0
    %187 = vmatprep.subr.mxu0 0.0
    %188 = vmatpush1.msra.mxu0 0.0
    %189 = vmatprep.subr.mxu0 0.0
    %190 = vmatpush1.msra.mxu0 0.0
    %191 = vmatprep.subr.mxu0 0.0
    %192 = vmatpush1.msra.mxu0 0.0
    %193 = vmatprep.subr.mxu0 0.0
    %194 = vmatpush1.msra.mxu0 0.0
    %195 = vmatprep.subr.mxu0 0.0
    %196 = vmatpush1.msra.mxu0 0.0
    %197 = vmatprep.subr.mxu0 0.0
    %198 = vmatpush1.msra.mxu0 0.0
    %199 = vmatprep.subr.mxu0 0.0
    %200 = vmatpush1.msra.mxu0 0.0
    %201 = vmatprep.subr.mxu0 0.0
    %202 = vmatpush1.msra.mxu0 0.0
    %203 = vmatprep.subr.mxu0 0.0
    %204 = vmatpush1.msra.mxu0 0.0
    %205 = vmatprep.subr.mxu0 0.0
    %206 = vmatpush1.msra.mxu0 0.0
    %207 = vmatprep.subr.mxu0 0.0
    %208 = vmatpush1.msra.mxu0 0.0
    %209 = vmatprep.subr.mxu0 0.0
    %210 = vmatpush1.msra.mxu0 0.0
    %211 = vmatprep.subr.mxu0 0.0
    %212 = vmatpush1.msra.mxu0 0.0
    %213 = vmatprep.subr.mxu0 0.0
    %214 = vmatpush1.msra.mxu0 0.0
    %215 = vmatprep.subr.mxu0 0.0
    %216 = vmatpush1.msra.mxu0 0.0
    %217 = vmatprep.subr.mxu0 0.0
    %218 = vmatpush1.msra.mxu0 0.0
    %219 = vmatprep.subr.mxu0 0.0
    %220 = vmatpush1.msra.mxu0 0.0
    %221 = vmatprep.subr.mxu0 0.0
    %222 = vmatpush1.msra.mxu0 0.0
    %223 = vmatprep.subr.mxu0 0.0
    %224 = vmatpush1.msra.mxu0 0.0
    %225 = vmatprep.mubr.f32.mxu0 0.0
    %226 = vmatmul.mubr.f32.gmra.mrb[0].mxu0 %v153
    %v227 = vpop.f32.mrb[0].mxu0
    %v228 = vadd.f32 %v148, %v227
    %v229 = vpop.f32.mrb[0].mxu0
    %v230 = vadd.f32 %v150, %v229
    %231 = vdwg.mxu0
    %232 = vrot.lane.b32.xlu0 %v37, 15
    %v233 = vpop.permute.xlu0 %232
    %234 = vrot.lane.b32.xlu0 %v39, 15
    %v235 = vpop.permute.xlu0 %234
    %vm236 = vcmp.lt.s32.totalorder %v16, 15
    %v237 = vsel %vm236, %v233, %v235
    %v238 = vsel %vm236, %v235, %v233
    %v239 = vsel %vm30, 1, 0
    %v240 = vsel %vm31, 1, 0
    %vm241 = vcmp.eq.s32.totalorder %v239, 1
    %vm242 = vcmp.eq.s32.totalorder %v240, 1
    %v243 = vsel %vm241, %v238, 0.0
    %v244 = vsel %vm242, %v237, 0.0
    %s245 = scalar_lea.vmem %s1, 16
    %v246 = vld [vmem:[%s245] sm:$0xff]
    %v248 = vsel %vm70, %v246, 0
    %v251 = vsel %vm74, %v243, 0
    %v254 = vsel %vm74, %v244, 0
    %256 = vmatprep.subr.mxu0 %v254
    %257 = vmatpush1.msra.mxu0 %v251
    %258 = vmatprep.subr.mxu0 0.0
    %259 = vmatpush1.msra.mxu0 0.0
    %260 = vmatprep.subr.mxu0 0.0
    %261 = vmatpush1.msra.mxu0 0.0
    %262 = vmatprep.subr.mxu0 0.0
    %263 = vmatpush1.msra.mxu0 0.0
    %264 = vmatprep.subr.mxu0 0.0
    %265 = vmatpush1.msra.mxu0 0.0
    %266 = vmatprep.subr.mxu0 0.0
    %267 = vmatpush1.msra.mxu0 0.0
    %268 = vmatprep.subr.mxu0 0.0
    %269 = vmatpush1.msra.mxu0 0.0
    %270 = vmatprep.subr.mxu0 0.0
    %271 = vmatpush1.msra.mxu0 0.0
    %272 = vmatprep.subr.mxu0 0.0
    %273 = vmatpush1.msra.mxu0 0.0
    %274 = vmatprep.subr.mxu0 0.0
    %275 = vmatpush1.msra.mxu0 0.0
    %276 = vmatprep.subr.mxu0 0.0
    %277 = vmatpush1.msra.mxu0 0.0
    %278 = vmatprep.subr.mxu0 0.0
    %279 = vmatpush1.msra.mxu0 0.0
    %280 = vmatprep.subr.mxu0 0.0
    %281 = vmatpush1.msra.mxu0 0.0
    %282 = vmatprep.subr.mxu0 0.0
    %283 = vmatpush1.msra.mxu0 0.0
    %284 = vmatprep.subr.mxu0 0.0
    %285 = vmatpush1.msra.mxu0 0.0
    %286 = vmatprep.subr.mxu0 0.0
    %287 = vmatpush1.msra.mxu0 0.0
    %288 = vmatprep.subr.mxu0 0.0
    %289 = vmatpush1.msra.mxu0 0.0
    %290 = vmatprep.subr.mxu0 0.0
    %291 = vmatpush1.msra.mxu0 0.0
    %292 = vmatprep.subr.mxu0 0.0
    %293 = vmatpush1.msra.mxu0 0.0
    %294 = vmatprep.subr.mxu0 0.0
    %295 = vmatpush1.msra.mxu0 0.0
    %296 = vmatprep.subr.mxu0 0.0
    %297 = vmatpush1.msra.mxu0 0.0
    %298 = vmatprep.subr.mxu0 0.0
    %299 = vmatpush1.msra.mxu0 0.0
    %300 = vmatprep.subr.mxu0 0.0
    %301 = vmatpush1.msra.mxu0 0.0
    %302 = vmatprep.subr.mxu0 0.0
    %303 = vmatpush1.msra.mxu0 0.0
    %304 = vmatprep.subr.mxu0 0.0
    %305 = vmatpush1.msra.mxu0 0.0
    %306 = vmatprep.subr.mxu0 0.0
    %307 = vmatpush1.msra.mxu0 0.0
    %308 = vmatprep.subr.mxu0 0.0
    %309 = vmatpush1.msra.mxu0 0.0
    %310 = vmatprep.subr.mxu0 0.0
    %311 = vmatpush1.msra.mxu0 0.0
    %312 = vmatprep.subr.mxu0 0.0
    %313 = vmatpush1.msra.mxu0 0.0
    %314 = vmatprep.subr.mxu0 0.0
    %315 = vmatpush1.msra.mxu0 0.0
    %316 = vmatprep.subr.mxu0 0.0
    %317 = vmatpush1.msra.mxu0 0.0
    %318 = vmatprep.subr.mxu0 0.0
    %319 = vmatpush1.msra.mxu0 0.0
    %320 = vmatprep.mubr.f32.mxu0 0.0
    %321 = vmatmul.mubr.f32.gmra.mrb[0].mxu0 %v248
    %v322 = vpop.f32.mrb[0].mxu0
    %v323 = vadd.f32 0.0, %v322
    %v324 = vpop.f32.mrb[0].mxu0
    %v325 = vadd.f32 0.0, %v324
    %326 = vdwg.mxu0
    %v327 = vadd.f32 %v228, %v323
    %v328 = vadd.f32 %v230, %v325
    %329 = vrot.lane.b32.xlu0 %v37, 1
    %v330 = vpop.permute.xlu0 %329
    %331 = vrot.lane.b32.xlu0 %v39, 1
    %v332 = vpop.permute.xlu0 %331
    %vm333 = vcmp.lt.s32.totalorder %v16, 1
    %v334 = vsel %vm333, %v330, %v332
    %v335 = vsel %vm333, %v332, %v330
    %v336 = vsel %vm24, 1, 0
    %v337 = vsel %vm25, 1, 0
    %vm338 = vcmp.eq.s32.totalorder %v336, 1
    %vm339 = vcmp.eq.s32.totalorder %v337, 1
    %v340 = vsel %vm338, %v335, 0.0
    %v341 = vsel %vm339, %v334, 0.0
    %s342 = scalar_lea.vmem %s1, 24
    %v343 = vld [vmem:[%s342] sm:$0xff]
    %v345 = vsel %vm70, %v343, 0
    %v348 = vsel %vm74, %v340, 0
    %v351 = vsel %vm74, %v341, 0
    %353 = vmatprep.subr.mxu0 %v351
    %354 = vmatpush1.msra.mxu0 %v348
    %355 = vmatprep.subr.mxu0 0.0
    %356 = vmatpush1.msra.mxu0 0.0
    %357 = vmatprep.subr.mxu0 0.0
    %358 = vmatpush1.msra.mxu0 0.0
    %359 = vmatprep.subr.mxu0 0.0
    %360 = vmatpush1.msra.mxu0 0.0
    %361 = vmatprep.subr.mxu0 0.0
    %362 = vmatpush1.msra.mxu0 0.0
    %363 = vmatprep.subr.mxu0 0.0
    %364 = vmatpush1.msra.mxu0 0.0
    %365 = vmatprep.subr.mxu0 0.0
    %366 = vmatpush1.msra.mxu0 0.0
    %367 = vmatprep.subr.mxu0 0.0
    %368 = vmatpush1.msra.mxu0 0.0
    %369 = vmatprep.subr.mxu0 0.0
    %370 = vmatpush1.msra.mxu0 0.0
    %371 = vmatprep.subr.mxu0 0.0
    %372 = vmatpush1.msra.mxu0 0.0
    %373 = vmatprep.subr.mxu0 0.0
    %374 = vmatpush1.msra.mxu0 0.0
    %375 = vmatprep.subr.mxu0 0.0
    %376 = vmatpush1.msra.mxu0 0.0
    %377 = vmatprep.subr.mxu0 0.0
    %378 = vmatpush1.msra.mxu0 0.0
    %379 = vmatprep.subr.mxu0 0.0
    %380 = vmatpush1.msra.mxu0 0.0
    %381 = vmatprep.subr.mxu0 0.0
    %382 = vmatpush1.msra.mxu0 0.0
    %383 = vmatprep.subr.mxu0 0.0
    %384 = vmatpush1.msra.mxu0 0.0
    %385 = vmatprep.subr.mxu0 0.0
    %386 = vmatpush1.msra.mxu0 0.0
    %387 = vmatprep.subr.mxu0 0.0
    %388 = vmatpush1.msra.mxu0 0.0
    %389 = vmatprep.subr.mxu0 0.0
    %390 = vmatpush1.msra.mxu0 0.0
    %391 = vmatprep.subr.mxu0 0.0
    %392 = vmatpush1.msra.mxu0 0.0
    %393 = vmatprep.subr.mxu0 0.0
    %394 = vmatpush1.msra.mxu0 0.0
    %395 = vmatprep.subr.mxu0 0.0
    %396 = vmatpush1.msra.mxu0 0.0
    %397 = vmatprep.subr.mxu0 0.0
    %398 = vmatpush1.msra.mxu0 0.0
    %399 = vmatprep.subr.mxu0 0.0
    %400 = vmatpush1.msra.mxu0 0.0
    %401 = vmatprep.subr.mxu0 0.0
    %402 = vmatpush1.msra.mxu0 0.0
    %403 = vmatprep.subr.mxu0 0.0
    %404 = vmatpush1.msra.mxu0 0.0
    %405 = vmatprep.subr.mxu0 0.0
    %406 = vmatpush1.msra.mxu0 0.0
    %407 = vmatprep.subr.mxu0 0.0
    %408 = vmatpush1.msra.mxu0 0.0
    %409 = vmatprep.subr.mxu0 0.0
    %410 = vmatpush1.msra.mxu0 0.0
    %411 = vmatprep.subr.mxu0 0.0
    %412 = vmatpush1.msra.mxu0 0.0
    %413 = vmatprep.subr.mxu0 0.0
    %414 = vmatpush1.msra.mxu0 0.0
    %415 = vmatprep.subr.mxu0 0.0
    %416 = vmatpush1.msra.mxu0 0.0
    %417 = vmatprep.mubr.f32.mxu0 0.0
    %418 = vmatmul.mubr.f32.gmra.mrb[0].mxu0 %v345
    %v419 = vpop.f32.mrb[0].mxu0
    %v420 = vadd.f32 0.0, %v419
    %v421 = vpop.f32.mrb[0].mxu0
    %v422 = vadd.f32 0.0, %v421
    %423 = vdwg.mxu0
    %v424 = vadd.f32 %v327, %v420
    %v425 = vadd.f32 %v328, %v422
    %s426 = scalar_lea.vmem %s1, 32
    %v427 = vld [vmem:[%s426] sm:$0xff]
    %v429 = vsel %vm70, %v427, 0
    %v431 = vsel %vm74, %v37, 0
    %v433 = vsel %vm74, %v39, 0
    %435 = vmatprep.subr.mxu0 %v433
    %436 = vmatpush1.msra.mxu0 %v431
    %437 = vmatprep.subr.mxu0 0.0
    %438 = vmatpush1.msra.mxu0 0.0
    %439 = vmatprep.subr.mxu0 0.0
    %440 = vmatpush1.msra.mxu0 0.0
    %441 = vmatprep.subr.mxu0 0.0
    %442 = vmatpush1.msra.mxu0 0.0
    %443 = vmatprep.subr.mxu0 0.0
    %444 = vmatpush1.msra.mxu0 0.0
    %445 = vmatprep.subr.mxu0 0.0
    %446 = vmatpush1.msra.mxu0 0.0
    %447 = vmatprep.subr.mxu0 0.0
    %448 = vmatpush1.msra.mxu0 0.0
    %449 = vmatprep.subr.mxu0 0.0
    %450 = vmatpush1.msra.mxu0 0.0
    %451 = vmatprep.subr.mxu0 0.0
    %452 = vmatpush1.msra.mxu0 0.0
    %453 = vmatprep.subr.mxu0 0.0
    %454 = vmatpush1.msra.mxu0 0.0
    %455 = vmatprep.subr.mxu0 0.0
    %456 = vmatpush1.msra.mxu0 0.0
    %457 = vmatprep.subr.mxu0 0.0
    %458 = vmatpush1.msra.mxu0 0.0
    %459 = vmatprep.subr.mxu0 0.0
    %460 = vmatpush1.msra.mxu0 0.0
    %461 = vmatprep.subr.mxu0 0.0
    %462 = vmatpush1.msra.mxu0 0.0
    %463 = vmatprep.subr.mxu0 0.0
    %464 = vmatpush1.msra.mxu0 0.0
    %465 = vmatprep.subr.mxu0 0.0
    %466 = vmatpush1.msra.mxu0 0.0
    %467 = vmatprep.subr.mxu0 0.0
    %468 = vmatpush1.msra.mxu0 0.0
    %469 = vmatprep.subr.mxu0 0.0
    %470 = vmatpush1.msra.mxu0 0.0
    %471 = vmatprep.subr.mxu0 0.0
    %472 = vmatpush1.msra.mxu0 0.0
    %473 = vmatprep.subr.mxu0 0.0
    %474 = vmatpush1.msra.mxu0 0.0
    %475 = vmatprep.subr.mxu0 0.0
    %476 = vmatpush1.msra.mxu0 0.0
    %477 = vmatprep.subr.mxu0 0.0
    %478 = vmatpush1.msra.mxu0 0.0
    %479 = vmatprep.subr.mxu0 0.0
    %480 = vmatpush1.msra.mxu0 0.0
    %481 = vmatprep.subr.mxu0 0.0
    %482 = vmatpush1.msra.mxu0 0.0
    %483 = vmatprep.subr.mxu0 0.0
    %484 = vmatpush1.msra.mxu0 0.0
    %485 = vmatprep.subr.mxu0 0.0
    %486 = vmatpush1.msra.mxu0 0.0
    %487 = vmatprep.subr.mxu0 0.0
    %488 = vmatpush1.msra.mxu0 0.0
    %489 = vmatprep.subr.mxu0 0.0
    %490 = vmatpush1.msra.mxu0 0.0
    %491 = vmatprep.subr.mxu0 0.0
    %492 = vmatpush1.msra.mxu0 0.0
    %493 = vmatprep.subr.mxu0 0.0
    %494 = vmatpush1.msra.mxu0 0.0
    %495 = vmatprep.subr.mxu0 0.0
    %496 = vmatpush1.msra.mxu0 0.0
    %497 = vmatprep.subr.mxu0 0.0
    %498 = vmatpush1.msra.mxu0 0.0
    %499 = vmatprep.mubr.f32.mxu0 0.0
    %500 = vmatmul.mubr.f32.gmra.mrb[0].mxu0 %v429
    %v501 = vpop.f32.mrb[0].mxu0
    %v502 = vadd.f32 0.0, %v501
    %v503 = vpop.f32.mrb[0].mxu0
    %v504 = vadd.f32 0.0, %v503
    %505 = vdwg.mxu0
    %v506 = vadd.f32 %v424, %v502
    %v507 = vadd.f32 %v425, %v504
    %508 = vrot.lane.b32.xlu0 %v37, 127
    %v509 = vpop.permute.xlu0 %508
    %510 = vrot.lane.b32.xlu0 %v39, 127
    %v511 = vpop.permute.xlu0 %510
    %vm512 = vcmp.lt.s32.totalorder %v16, 127
    %v513 = vsel %vm512, %v509, %v511
    %v514 = vsel %vm512, %v511, %v509
    %v515 = vsel %vm26, 1, 0
    %v516 = vsel %vm27, 1, 0
    %vm517 = vcmp.eq.s32.totalorder %v515, 1
    %vm518 = vcmp.eq.s32.totalorder %v516, 1
    %v519 = vsel %vm517, %v513, 0.0
    %v520 = vsel %vm518, %v514, 0.0
    %s521 = scalar_lea.vmem %s1, 40
    %v522 = vld [vmem:[%s521] sm:$0xff]
    %v524 = vsel %vm70, %v522, 0
    %v527 = vsel %vm74, %v519, 0
    %v530 = vsel %vm74, %v520, 0
    %532 = vmatprep.subr.mxu0 %v530
    %533 = vmatpush1.msra.mxu0 %v527
    %534 = vmatprep.subr.mxu0 0.0
    %535 = vmatpush1.msra.mxu0 0.0
    %536 = vmatprep.subr.mxu0 0.0
    %537 = vmatpush1.msra.mxu0 0.0
    %538 = vmatprep.subr.mxu0 0.0
    %539 = vmatpush1.msra.mxu0 0.0
    %540 = vmatprep.subr.mxu0 0.0
    %541 = vmatpush1.msra.mxu0 0.0
    %542 = vmatprep.subr.mxu0 0.0
    %543 = vmatpush1.msra.mxu0 0.0
    %544 = vmatprep.subr.mxu0 0.0
    %545 = vmatpush1.msra.mxu0 0.0
    %546 = vmatprep.subr.mxu0 0.0
    %547 = vmatpush1.msra.mxu0 0.0
    %548 = vmatprep.subr.mxu0 0.0
    %549 = vmatpush1.msra.mxu0 0.0
    %550 = vmatprep.subr.mxu0 0.0
    %551 = vmatpush1.msra.mxu0 0.0
    %552 = vmatprep.subr.mxu0 0.0
    %553 = vmatpush1.msra.mxu0 0.0
    %554 = vmatprep.subr.mxu0 0.0
    %555 = vmatpush1.msra.mxu0 0.0
    %556 = vmatprep.subr.mxu0 0.0
    %557 = vmatpush1.msra.mxu0 0.0
    %558 = vmatprep.subr.mxu0 0.0
    %559 = vmatpush1.msra.mxu0 0.0
    %560 = vmatprep.subr.mxu0 0.0
    %561 = vmatpush1.msra.mxu0 0.0
    %562 = vmatprep.subr.mxu0 0.0
    %563 = vmatpush1.msra.mxu0 0.0
    %564 = vmatprep.subr.mxu0 0.0
    %565 = vmatpush1.msra.mxu0 0.0
    %566 = vmatprep.subr.mxu0 0.0
    %567 = vmatpush1.msra.mxu0 0.0
    %568 = vmatprep.subr.mxu0 0.0
    %569 = vmatpush1.msra.mxu0 0.0
    %570 = vmatprep.subr.mxu0 0.0
    %571 = vmatpush1.msra.mxu0 0.0
    %572 = vmatprep.subr.mxu0 0.0
    %573 = vmatpush1.msra.mxu0 0.0
    %574 = vmatprep.subr.mxu0 0.0
    %575 = vmatpush1.msra.mxu0 0.0
    %576 = vmatprep.subr.mxu0 0.0
    %577 = vmatpush1.msra.mxu0 0.0
    %578 = vmatprep.subr.mxu0 0.0
    %579 = vmatpush1.msra.mxu0 0.0
    %580 = vmatprep.subr.mxu0 0.0
    %581 = vmatpush1.msra.mxu0 0.0
    %582 = vmatprep.subr.mxu0 0.0
    %583 = vmatpush1.msra.mxu0 0.0
    %584 = vmatprep.subr.mxu0 0.0
    %585 = vmatpush1.msra.mxu0 0.0
    %586 = vmatprep.subr.mxu0 0.0
    %587 = vmatpush1.msra.mxu0 0.0
    %588 = vmatprep.subr.mxu0 0.0
    %589 = vmatpush1.msra.mxu0 0.0
    %590 = vmatprep.subr.mxu0 0.0
    %591 = vmatpush1.msra.mxu0 0.0
    %592 = vmatprep.subr.mxu0 0.0
    %593 = vmatpush1.msra.mxu0 0.0
    %594 = vmatprep.subr.mxu0 0.0
    %595 = vmatpush1.msra.mxu0 0.0
    %596 = vmatprep.mubr.f32.mxu0 0.0
    %597 = vmatmul.mubr.f32.gmra.mrb[0].mxu0 %v524
    %v598 = vpop.f32.mrb[0].mxu0
    %v599 = vadd.f32 0.0, %v598
    %v600 = vpop.f32.mrb[0].mxu0
    %v601 = vadd.f32 0.0, %v600
    %602 = vdwg.mxu0
    %v603 = vadd.f32 %v506, %v599
    %v604 = vadd.f32 %v507, %v601
    %605 = vrot.lane.b32.xlu0 %v37, 113
    %v606 = vpop.permute.xlu0 %605
    %607 = vrot.lane.b32.xlu0 %v39, 113
    %v608 = vpop.permute.xlu0 %607
    %vm609 = vcmp.lt.s32.totalorder %v16, 113
    %v610 = vsel %vm609, %v606, %v608
    %v611 = vsel %vm609, %v608, %v606
    %v612 = vsel %vm32, 1, 0
    %v613 = vsel %vm33, 1, 0
    %vm614 = vcmp.eq.s32.totalorder %v612, 1
    %vm615 = vcmp.eq.s32.totalorder %v613, 1
    %v616 = vsel %vm614, %v610, 0.0
    %v617 = vsel %vm615, %v611, 0.0
    %s618 = scalar_lea.vmem %s1, 48
    %v619 = vld [vmem:[%s618] sm:$0xff]
    %v621 = vsel %vm70, %v619, 0
    %v624 = vsel %vm74, %v616, 0
    %v627 = vsel %vm74, %v617, 0
    %629 = vmatprep.subr.mxu0 %v627
    %630 = vmatpush1.msra.mxu0 %v624
    %631 = vmatprep.subr.mxu0 0.0
    %632 = vmatpush1.msra.mxu0 0.0
    %633 = vmatprep.subr.mxu0 0.0
    %634 = vmatpush1.msra.mxu0 0.0
    %635 = vmatprep.subr.mxu0 0.0
    %636 = vmatpush1.msra.mxu0 0.0
    %637 = vmatprep.subr.mxu0 0.0
    %638 = vmatpush1.msra.mxu0 0.0
    %639 = vmatprep.subr.mxu0 0.0
    %640 = vmatpush1.msra.mxu0 0.0
    %641 = vmatprep.subr.mxu0 0.0
    %642 = vmatpush1.msra.mxu0 0.0
    %643 = vmatprep.subr.mxu0 0.0
    %644 = vmatpush1.msra.mxu0 0.0
    %645 = vmatprep.subr.mxu0 0.0
    %646 = vmatpush1.msra.mxu0 0.0
    %647 = vmatprep.subr.mxu0 0.0
    %648 = vmatpush1.msra.mxu0 0.0
    %649 = vmatprep.subr.mxu0 0.0
    %650 = vmatpush1.msra.mxu0 0.0
    %651 = vmatprep.subr.mxu0 0.0
    %652 = vmatpush1.msra.mxu0 0.0
    %653 = vmatprep.subr.mxu0 0.0
    %654 = vmatpush1.msra.mxu0 0.0
    %655 = vmatprep.subr.mxu0 0.0
    %656 = vmatpush1.msra.mxu0 0.0
    %657 = vmatprep.subr.mxu0 0.0
    %658 = vmatpush1.msra.mxu0 0.0
    %659 = vmatprep.subr.mxu0 0.0
    %660 = vmatpush1.msra.mxu0 0.0
    %661 = vmatprep.subr.mxu0 0.0
    %662 = vmatpush1.msra.mxu0 0.0
    %663 = vmatprep.subr.mxu0 0.0
    %664 = vmatpush1.msra.mxu0 0.0
    %665 = vmatprep.subr.mxu0 0.0
    %666 = vmatpush1.msra.mxu0 0.0
    %667 = vmatprep.subr.mxu0 0.0
    %668 = vmatpush1.msra.mxu0 0.0
    %669 = vmatprep.subr.mxu0 0.0
    %670 = vmatpush1.msra.mxu0 0.0
    %671 = vmatprep.subr.mxu0 0.0
    %672 = vmatpush1.msra.mxu0 0.0
    %673 = vmatprep.subr.mxu0 0.0
    %674 = vmatpush1.msra.mxu0 0.0
    %675 = vmatprep.subr.mxu0 0.0
    %676 = vmatpush1.msra.mxu0 0.0
    %677 = vmatprep.subr.mxu0 0.0
    %678 = vmatpush1.msra.mxu0 0.0
    %679 = vmatprep.subr.mxu0 0.0
    %680 = vmatpush1.msra.mxu0 0.0
    %681 = vmatprep.subr.mxu0 0.0
    %682 = vmatpush1.msra.mxu0 0.0
    %683 = vmatprep.subr.mxu0 0.0
    %684 = vmatpush1.msra.mxu0 0.0
    %685 = vmatprep.subr.mxu0 0.0
    %686 = vmatpush1.msra.mxu0 0.0
    %687 = vmatprep.subr.mxu0 0.0
    %688 = vmatpush1.msra.mxu0 0.0
    %689 = vmatprep.subr.mxu0 0.0
    %690 = vmatpush1.msra.mxu0 0.0
    %691 = vmatprep.subr.mxu0 0.0
    %692 = vmatpush1.msra.mxu0 0.0
    %693 = vmatprep.mubr.f32.mxu0 0.0
    %694 = vmatmul.mubr.f32.gmra.mrb[0].mxu0 %v621
    %v695 = vpop.f32.mrb[0].mxu0
    %v696 = vadd.f32 0.0, %v695
    %v697 = vpop.f32.mrb[0].mxu0
    %v698 = vadd.f32 0.0, %v697
    %699 = vdwg.mxu0
    %v700 = vadd.f32 %v603, %v696
    %v701 = vadd.f32 %v604, %v698
    %702 = vrot.lane.b32.xlu0 %v37, 112
    %v703 = vpop.permute.xlu0 %702
    %704 = vrot.lane.b32.xlu0 %v39, 112
    %v705 = vpop.permute.xlu0 %704
    %vm706 = vcmp.lt.s32.totalorder %v16, 112
    %v707 = vsel %vm706, %v703, %v705
    %v708 = vsel %vm706, %v705, %v703
    %v709 = vsel %vm20, 1, 0
    %v710 = vsel %vm21, 1, 0
    %vm711 = vcmp.eq.s32.totalorder %v709, 1
    %vm712 = vcmp.eq.s32.totalorder %v710, 1
    %v713 = vsel %vm711, %v707, 0.0
    %v714 = vsel %vm712, %v708, 0.0
    %s715 = scalar_lea.vmem %s1, 56
    %v716 = vld [vmem:[%s715] sm:$0xff]
    %v718 = vsel %vm70, %v716, 0
    %v721 = vsel %vm74, %v713, 0
    %v724 = vsel %vm74, %v714, 0
    %726 = vmatprep.subr.mxu0 %v724
    %727 = vmatpush1.msra.mxu0 %v721
    %728 = vmatprep.subr.mxu0 0.0
    %729 = vmatpush1.msra.mxu0 0.0
    %730 = vmatprep.subr.mxu0 0.0
    %731 = vmatpush1.msra.mxu0 0.0
    %732 = vmatprep.subr.mxu0 0.0
    %733 = vmatpush1.msra.mxu0 0.0
    %734 = vmatprep.subr.mxu0 0.0
    %735 = vmatpush1.msra.mxu0 0.0
    %736 = vmatprep.subr.mxu0 0.0
    %737 = vmatpush1.msra.mxu0 0.0
    %738 = vmatprep.subr.mxu0 0.0
    %739 = vmatpush1.msra.mxu0 0.0
    %740 = vmatprep.subr.mxu0 0.0
    %741 = vmatpush1.msra.mxu0 0.0
    %742 = vmatprep.subr.mxu0 0.0
    %743 = vmatpush1.msra.mxu0 0.0
    %744 = vmatprep.subr.mxu0 0.0
    %745 = vmatpush1.msra.mxu0 0.0
    %746 = vmatprep.subr.mxu0 0.0
    %747 = vmatpush1.msra.mxu0 0.0
    %748 = vmatprep.subr.mxu0 0.0
    %749 = vmatpush1.msra.mxu0 0.0
    %750 = vmatprep.subr.mxu0 0.0
    %751 = vmatpush1.msra.mxu0 0.0
    %752 = vmatprep.subr.mxu0 0.0
    %753 = vmatpush1.msra.mxu0 0.0
    %754 = vmatprep.subr.mxu0 0.0
    %755 = vmatpush1.msra.mxu0 0.0
    %756 = vmatprep.subr.mxu0 0.0
    %757 = vmatpush1.msra.mxu0 0.0
    %758 = vmatprep.subr.mxu0 0.0
    %759 = vmatpush1.msra.mxu0 0.0
    %760 = vmatprep.subr.mxu0 0.0
    %761 = vmatpush1.msra.mxu0 0.0
    %762 = vmatprep.subr.mxu0 0.0
    %763 = vmatpush1.msra.mxu0 0.0
    %764 = vmatprep.subr.mxu0 0.0
    %765 = vmatpush1.msra.mxu0 0.0
    %766 = vmatprep.subr.mxu0 0.0
    %767 = vmatpush1.msra.mxu0 0.0
    %768 = vmatprep.subr.mxu0 0.0
    %769 = vmatpush1.msra.mxu0 0.0
    %770 = vmatprep.subr.mxu0 0.0
    %771 = vmatpush1.msra.mxu0 0.0
    %772 = vmatprep.subr.mxu0 0.0
    %773 = vmatpush1.msra.mxu0 0.0
    %774 = vmatprep.subr.mxu0 0.0
    %775 = vmatpush1.msra.mxu0 0.0
    %776 = vmatprep.subr.mxu0 0.0
    %777 = vmatpush1.msra.mxu0 0.0
    %778 = vmatprep.subr.mxu0 0.0
    %779 = vmatpush1.msra.mxu0 0.0
    %780 = vmatprep.subr.mxu0 0.0
    %781 = vmatpush1.msra.mxu0 0.0
    %782 = vmatprep.subr.mxu0 0.0
    %783 = vmatpush1.msra.mxu0 0.0
    %784 = vmatprep.subr.mxu0 0.0
    %785 = vmatpush1.msra.mxu0 0.0
    %786 = vmatprep.subr.mxu0 0.0
    %787 = vmatpush1.msra.mxu0 0.0
    %788 = vmatprep.subr.mxu0 0.0
    %789 = vmatpush1.msra.mxu0 0.0
    %790 = vmatprep.mubr.f32.mxu0 0.0
    %791 = vmatmul.mubr.f32.gmra.mrb[0].mxu0 %v718
    %v792 = vpop.f32.mrb[0].mxu0
    %v793 = vadd.f32 0.0, %v792
    %v794 = vpop.f32.mrb[0].mxu0
    %v795 = vadd.f32 0.0, %v794
    %796 = vdwg.mxu0
    %v797 = vadd.f32 %v700, %v793
    %v798 = vadd.f32 %v701, %v795
    %799 = vrot.lane.b32.xlu0 %v37, 111
    %v800 = vpop.permute.xlu0 %799
    %801 = vrot.lane.b32.xlu0 %v39, 111
    %v802 = vpop.permute.xlu0 %801
    %vm803 = vcmp.lt.s32.totalorder %v16, 111
    %v804 = vsel %vm803, %v800, %v802
    %v805 = vsel %vm803, %v802, %v800
    %v806 = vsel %vm34, 1, 0
    %v807 = vsel %vm35, 1, 0
    %vm808 = vcmp.eq.s32.totalorder %v806, 1
    %vm809 = vcmp.eq.s32.totalorder %v807, 1
    %v810 = vsel %vm808, %v804, 0.0
    %v811 = vsel %vm809, %v805, 0.0
    %s812 = scalar_lea.vmem %s1, 64
    %v813 = vld [vmem:[%s812] sm:$0xff]
    %v815 = vsel %vm70, %v813, 0
    %v818 = vsel %vm74, %v810, 0
    %v821 = vsel %vm74, %v811, 0
    %823 = vmatprep.subr.mxu0 %v821
    %824 = vmatpush1.msra.mxu0 %v818
    %825 = vmatprep.subr.mxu0 0.0
    %826 = vmatpush1.msra.mxu0 0.0
    %827 = vmatprep.subr.mxu0 0.0
    %828 = vmatpush1.msra.mxu0 0.0
    %829 = vmatprep.subr.mxu0 0.0
    %830 = vmatpush1.msra.mxu0 0.0
    %831 = vmatprep.subr.mxu0 0.0
    %832 = vmatpush1.msra.mxu0 0.0
    %833 = vmatprep.subr.mxu0 0.0
    %834 = vmatpush1.msra.mxu0 0.0
    %835 = vmatprep.subr.mxu0 0.0
    %836 = vmatpush1.msra.mxu0 0.0
    %837 = vmatprep.subr.mxu0 0.0
    %838 = vmatpush1.msra.mxu0 0.0
    %839 = vmatprep.subr.mxu0 0.0
    %840 = vmatpush1.msra.mxu0 0.0
    %841 = vmatprep.subr.mxu0 0.0
    %842 = vmatpush1.msra.mxu0 0.0
    %843 = vmatprep.subr.mxu0 0.0
    %844 = vmatpush1.msra.mxu0 0.0
    %845 = vmatprep.subr.mxu0 0.0
    %846 = vmatpush1.msra.mxu0 0.0
    %847 = vmatprep.subr.mxu0 0.0
    %848 = vmatpush1.msra.mxu0 0.0
    %849 = vmatprep.subr.mxu0 0.0
    %850 = vmatpush1.msra.mxu0 0.0
    %851 = vmatprep.subr.mxu0 0.0
    %852 = vmatpush1.msra.mxu0 0.0
    %853 = vmatprep.subr.mxu0 0.0
    %854 = vmatpush1.msra.mxu0 0.0
    %855 = vmatprep.subr.mxu0 0.0
    %856 = vmatpush1.msra.mxu0 0.0
    %857 = vmatprep.subr.mxu0 0.0
    %858 = vmatpush1.msra.mxu0 0.0
    %859 = vmatprep.subr.mxu0 0.0
    %860 = vmatpush1.msra.mxu0 0.0
    %861 = vmatprep.subr.mxu0 0.0
    %862 = vmatpush1.msra.mxu0 0.0
    %863 = vmatprep.subr.mxu0 0.0
    %864 = vmatpush1.msra.mxu0 0.0
    %865 = vmatprep.subr.mxu0 0.0
    %866 = vmatpush1.msra.mxu0 0.0
    %867 = vmatprep.subr.mxu0 0.0
    %868 = vmatpush1.msra.mxu0 0.0
    %869 = vmatprep.subr.mxu0 0.0
    %870 = vmatpush1.msra.mxu0 0.0
    %871 = vmatprep.subr.mxu0 0.0
    %872 = vmatpush1.msra.mxu0 0.0
    %873 = vmatprep.subr.mxu0 0.0
    %874 = vmatpush1.msra.mxu0 0.0
    %875 = vmatprep.subr.mxu0 0.0
    %876 = vmatpush1.msra.mxu0 0.0
    %877 = vmatprep.subr.mxu0 0.0
    %878 = vmatpush1.msra.mxu0 0.0
    %879 = vmatprep.subr.mxu0 0.0
    %880 = vmatpush1.msra.mxu0 0.0
    %881 = vmatprep.subr.mxu0 0.0
    %882 = vmatpush1.msra.mxu0 0.0
    %883 = vmatprep.subr.mxu0 0.0
    %884 = vmatpush1.msra.mxu0 0.0
    %885 = vmatprep.subr.mxu0 0.0
    %886 = vmatpush1.msra.mxu0 0.0
    %887 = vmatprep.mubr.f32.mxu0 0.0
    %888 = vmatmul.mubr.f32.gmra.mrb[0].mxu0 %v815
    %v889 = vpop.f32.mrb[0].mxu0
    %v890 = vadd.f32 0.0, %v889
    %v891 = vpop.f32.mrb[0].mxu0
    %v892 = vadd.f32 0.0, %v891
    %893 = vdwg.mxu0
    %v894 = vadd.f32 %v797, %v890
    %v895 = vadd.f32 %v798, %v892
    %897 = vset.pattern.permute.xlu0 0
    %898 = vperm.xlu0 %897, %v36
    %v899 = vpop.permute.xlu0 %898
    %v901 = vadd.f32 %v894, %v899
    %v902 = vadd.f32 %v895, %v899
    %v903 = vmax.f32 %v901, 0.0
    %v904 = vmax.f32 %v902, 0.0
    %905 = vst [vmem:[#allocation2] sm:$0xff] %v903
    %906 = vst [vmem:[#allocation2 + $0x8] sm:$0xff] %v904
    %s907 = scalar_lea.vmem %s0, 8
    %v908 = vld [vmem:[%s907] sm:$0xff]
    %v910 = vcombine.high %v908, %v908
    %912 = vrot.lane.b32.xlu0 %v908, 17
    %v913 = vpop.permute.xlu0 %912
    %914 = vrot.lane.b32.xlu0 %v910, 17
    %v915 = vpop.permute.xlu0 %914
    %v916 = vsel %vm45, %v913, %v915
    %v917 = vsel %vm45, %v915, %v913
    %v918 = vsel %vm50, %v917, 0.0
    %v919 = vsel %vm51, %v916, 0.0
    %v920 = vld [vmem:[%s1] sm:$0xff]
    %921 = vrot.lane.b32.xlu0 %v908, 16
    %v922 = vpop.permute.xlu0 %921
    %923 = vrot.lane.b32.xlu0 %v910, 16
    %v924 = vpop.permute.xlu0 %923
    %v925 = vsel %vm59, %v922, %v924
    %v926 = vsel %vm59, %v924, %v922
    %v927 = vsel %vm64, %v926, 0.0
    %v928 = vsel %vm65, %v925, 0.0
    %v929 = vld [vmem:[%s68] sm:$0xff]
    %v931 = vsel %vm70, %v929, 0
    %v934 = vsel %vm74, %v927, 0
    %v937 = vsel %vm74, %v928, 0
    %939 = vmatprep.subr.mxu0 %v937
    %940 = vmatpush1.msra.mxu0 %v934
    %941 = vmatprep.subr.mxu0 0.0
    %942 = vmatpush1.msra.mxu0 0.0
    %943 = vmatprep.subr.mxu0 0.0
    %944 = vmatpush1.msra.mxu0 0.0
    %945 = vmatprep.subr.mxu0 0.0
    %946 = vmatpush1.msra.mxu0 0.0
    %947 = vmatprep.subr.mxu0 0.0
    %948 = vmatpush1.msra.mxu0 0.0
    %949 = vmatprep.subr.mxu0 0.0
    %950 = vmatpush1.msra.mxu0 0.0
    %951 = vmatprep.subr.mxu0 0.0
    %952 = vmatpush1.msra.mxu0 0.0
    %953 = vmatprep.subr.mxu0 0.0
    %954 = vmatpush1.msra.mxu0 0.0
    %955 = vmatprep.subr.mxu0 0.0
    %956 = vmatpush1.msra.mxu0 0.0
    %957 = vmatprep.subr.mxu0 0.0
    %958 = vmatpush1.msra.mxu0 0.0
    %959 = vmatprep.subr.mxu0 0.0
    %960 = vmatpush1.msra.mxu0 0.0
    %961 = vmatprep.subr.mxu0 0.0
    %962 = vmatpush1.msra.mxu0 0.0
    %963 = vmatprep.subr.mxu0 0.0
    %964 = vmatpush1.msra.mxu0 0.0
    %965 = vmatprep.subr.mxu0 0.0
    %966 = vmatpush1.msra.mxu0 0.0
    %967 = vmatprep.subr.mxu0 0.0
    %968 = vmatpush1.msra.mxu0 0.0
    %969 = vmatprep.subr.mxu0 0.0
    %970 = vmatpush1.msra.mxu0 0.0
    %971 = vmatprep.subr.mxu0 0.0
    %972 = vmatpush1.msra.mxu0 0.0
    %973 = vmatprep.subr.mxu0 0.0
    %974 = vmatpush1.msra.mxu0 0.0
    %975 = vmatprep.subr.mxu0 0.0
    %976 = vmatpush1.msra.mxu0 0.0
    %977 = vmatprep.subr.mxu0 0.0
    %978 = vmatpush1.msra.mxu0 0.0
    %979 = vmatprep.subr.mxu0 0.0
    %980 = vmatpush1.msra.mxu0 0.0
    %981 = vmatprep.subr.mxu0 0.0
    %982 = vmatpush1.msra.mxu0 0.0
    %983 = vmatprep.subr.mxu0 0.0
    %984 = vmatpush1.msra.mxu0 0.0
    %985 = vmatprep.subr.mxu0 0.0
    %986 = vmatpush1.msra.mxu0 0.0
    %987 = vmatprep.subr.mxu0 0.0
    %988 = vmatpush1.msra.mxu0 0.0
    %989 = vmatprep.subr.mxu0 0.0
    %990 = vmatpush1.msra.mxu0 0.0
    %991 = vmatprep.subr.mxu0 0.0
    %992 = vmatpush1.msra.mxu0 0.0
    %993 = vmatprep.subr.mxu0 0.0
    %994 = vmatpush1.msra.mxu0 0.0
    %995 = vmatprep.subr.mxu0 0.0
    %996 = vmatpush1.msra.mxu0 0.0
    %997 = vmatprep.subr.mxu0 0.0
    %998 = vmatpush1.msra.mxu0 0.0
    %999 = vmatprep.subr.mxu0 0.0
    %1000 = vmatpush1.msra.mxu0 0.0
    %1001 = vmatprep.subr.mxu0 0.0
    %1002 = vmatpush1.msra.mxu0 0.0
    %1003 = vmatprep.mubr.f32.mxu0 0.0
    %1004 = vmatmul.mubr.f32.gmra.mrb[0].mxu0 %v931
    %v1005 = vpop.f32.mrb[0].mxu0
    %v1006 = vadd.f32 0.0, %v1005
    %v1007 = vpop.f32.mrb[0].mxu0
    %v1008 = vadd.f32 0.0, %v1007
    %1009 = vdwg.mxu0
    %v1011 = vsel %vm70, %v920, 0
    %v1014 = vsel %vm74, %v918, 0
    %v1017 = vsel %vm74, %v919, 0
    %1019 = vmatprep.subr.mxu0 %v1017
    %1020 = vmatpush1.msra.mxu0 %v1014
    %1021 = vmatprep.subr.mxu0 0.0
    %1022 = vmatpush1.msra.mxu0 0.0
    %1023 = vmatprep.subr.mxu0 0.0
    %1024 = vmatpush1.msra.mxu0 0.0
    %1025 = vmatprep.subr.mxu0 0.0
    %1026 = vmatpush1.msra.mxu0 0.0
    %1027 = vmatprep.subr.mxu0 0.0
    %1028 = vmatpush1.msra.mxu0 0.0
    %1029 = vmatprep.subr.mxu0 0.0
    %1030 = vmatpush1.msra.mxu0 0.0
    %1031 = vmatprep.subr.mxu0 0.0
    %1032 = vmatpush1.msra.mxu0 0.0
    %1033 = vmatprep.subr.mxu0 0.0
    %1034 = vmatpush1.msra.mxu0 0.0
    %1035 = vmatprep.subr.mxu0 0.0
    %1036 = vmatpush1.msra.mxu0 0.0
    %1037 = vmatprep.subr.mxu0 0.0
    %1038 = vmatpush1.msra.mxu0 0.0
    %1039 = vmatprep.subr.mxu0 0.0
    %1040 = vmatpush1.msra.mxu0 0.0
    %1041 = vmatprep.subr.mxu0 0.0
    %1042 = vmatpush1.msra.mxu0 0.0
    %1043 = vmatprep.subr.mxu0 0.0
    %1044 = vmatpush1.msra.mxu0 0.0
    %1045 = vmatprep.subr.mxu0 0.0
    %1046 = vmatpush1.msra.mxu0 0.0
    %1047 = vmatprep.subr.mxu0 0.0
    %1048 = vmatpush1.msra.mxu0 0.0
    %1049 = vmatprep.subr.mxu0 0.0
    %1050 = vmatpush1.msra.mxu0 0.0
    %1051 = vmatprep.subr.mxu0 0.0
    %1052 = vmatpush1.msra.mxu0 0.0
    %1053 = vmatprep.subr.mxu0 0.0
    %1054 = vmatpush1.msra.mxu0 0.0
    %1055 = vmatprep.subr.mxu0 0.0
    %1056 = vmatpush1.msra.mxu0 0.0
    %1057 = vmatprep.subr.mxu0 0.0
    %1058 = vmatpush1.msra.mxu0 0.0
    %1059 = vmatprep.subr.mxu0 0.0
    %1060 = vmatpush1.msra.mxu0 0.0
    %1061 = vmatprep.subr.mxu0 0.0
    %1062 = vmatpush1.msra.mxu0 0.0
    %1063 = vmatprep.subr.mxu0 0.0
    %1064 = vmatpush1.msra.mxu0 0.0
    %1065 = vmatprep.subr.mxu0 0.0
    %1066 = vmatpush1.msra.mxu0 0.0
    %1067 = vmatprep.subr.mxu0 0.0
    %1068 = vmatpush1.msra.mxu0 0.0
    %1069 = vmatprep.subr.mxu0 0.0
    %1070 = vmatpush1.msra.mxu0 0.0
    %1071 = vmatprep.subr.mxu0 0.0
    %1072 = vmatpush1.msra.mxu0 0.0
    %1073 = vmatprep.subr.mxu0 0.0
    %1074 = vmatpush1.msra.mxu0 0.0
    %1075 = vmatprep.subr.mxu0 0.0
    %1076 = vmatpush1.msra.mxu0 0.0
    %1077 = vmatprep.subr.mxu0 0.0
    %1078 = vmatpush1.msra.mxu0 0.0
    %1079 = vmatprep.subr.mxu0 0.0
    %1080 = vmatpush1.msra.mxu0 0.0
    %1081 = vmatprep.subr.mxu0 0.0
    %1082 = vmatpush1.msra.mxu0 0.0
    %1083 = vmatprep.mubr.f32.mxu0 0.0
    %1084 = vmatmul.mubr.f32.gmra.mrb[0].mxu0 %v1011
    %v1085 = vpop.f32.mrb[0].mxu0
    %v1086 = vadd.f32 %v1006, %v1085
    %v1087 = vpop.f32.mrb[0].mxu0
    %v1088 = vadd.f32 %v1008, %v1087
    %1089 = vdwg.mxu0
    %1090 = vrot.lane.b32.xlu0 %v908, 15
    %v1091 = vpop.permute.xlu0 %1090
    %1092 = vrot.lane.b32.xlu0 %v910, 15
    %v1093 = vpop.permute.xlu0 %1092
    %v1094 = vsel %vm236, %v1091, %v1093
    %v1095 = vsel %vm236, %v1093, %v1091
    %v1096 = vsel %vm241, %v1095, 0.0
    %v1097 = vsel %vm242, %v1094, 0.0
    %v1098 = vld [vmem:[%s245] sm:$0xff]
    %v1100 = vsel %vm70, %v1098, 0
    %v1103 = vsel %vm74, %v1096, 0
    %v1106 = vsel %vm74, %v1097, 0
    %1108 = vmatprep.subr.mxu0 %v1106
    %1109 = vmatpush1.msra.mxu0 %v1103
    %1110 = vmatprep.subr.mxu0 0.0
    %1111 = vmatpush1.msra.mxu0 0.0
    %1112 = vmatprep.subr.mxu0 0.0
    %1113 = vmatpush1.msra.mxu0 0.0
    %1114 = vmatprep.subr.mxu0 0.0
    %1115 = vmatpush1.msra.mxu0 0.0
    %1116 = vmatprep.subr.mxu0 0.0
    %1117 = vmatpush1.msra.mxu0 0.0
    %1118 = vmatprep.subr.mxu0 0.0
    %1119 = vmatpush1.msra.mxu0 0.0
    %1120 = vmatprep.subr.mxu0 0.0
    %1121 = vmatpush1.msra.mxu0 0.0
    %1122 = vmatprep.subr.mxu0 0.0
    %1123 = vmatpush1.msra.mxu0 0.0
    %1124 = vmatprep.subr.mxu0 0.0
    %1125 = vmatpush1.msra.mxu0 0.0
    %1126 = vmatprep.subr.mxu0 0.0
    %1127 = vmatpush1.msra.mxu0 0.0
    %1128 = vmatprep.subr.mxu0 0.0
    %1129 = vmatpush1.msra.mxu0 0.0
    %1130 = vmatprep.subr.mxu0 0.0
    %1131 = vmatpush1.msra.mxu0 0.0
    %1132 = vmatprep.subr.mxu0 0.0
    %1133 = vmatpush1.msra.mxu0 0.0
    %1134 = vmatprep.subr.mxu0 0.0
    %1135 = vmatpush1.msra.mxu0 0.0
    %1136 = vmatprep.subr.mxu0 0.0
    %1137 = vmatpush1.msra.mxu0 0.0
    %1138 = vmatprep.subr.mxu0 0.0
    %1139 = vmatpush1.msra.mxu0 0.0
    %1140 = vmatprep.subr.mxu0 0.0
    %1141 = vmatpush1.msra.mxu0 0.0
    %1142 = vmatprep.subr.mxu0 0.0
    %1143 = vmatpush1.msra.mxu0 0.0
    %1144 = vmatprep.subr.mxu0 0.0
    %1145 = vmatpush1.msra.mxu0 0.0
    %1146 = vmatprep.subr.mxu0 0.0
    %1147 = vmatpush1.msra.mxu0 0.0
    %1148 = vmatprep.subr.mxu0 0.0
    %1149 = vmatpush1.msra.mxu0 0.0
    %1150 = vmatprep.subr.mxu0 0.0
    %1151 = vmatpush1.msra.mxu0 0.0
    %1152 = vmatprep.subr.mxu0 0.0
    %1153 = vmatpush1.msra.mxu0 0.0
    %1154 = vmatprep.subr.mxu0 0.0
    %1155 = vmatpush1.msra.mxu0 0.0
    %1156 = vmatprep.subr.mxu0 0.0
    %1157 = vmatpush1.msra.mxu0 0.0
    %1158 = vmatprep.subr.mxu0 0.0
    %1159 = vmatpush1.msra.mxu0 0.0
    %1160 = vmatprep.subr.mxu0 0.0
    %1161 = vmatpush1.msra.mxu0 0.0
    %1162 = vmatprep.subr.mxu0 0.0
    %1163 = vmatpush1.msra.mxu0 0.0
    %1164 = vmatprep.subr.mxu0 0.0
    %1165 = vmatpush1.msra.mxu0 0.0
    %1166 = vmatprep.subr.mxu0 0.0
    %1167 = vmatpush1.msra.mxu0 0.0
    %1168 = vmatprep.subr.mxu0 0.0
    %1169 = vmatpush1.msra.mxu0 0.0
    %1170 = vmatprep.subr.mxu0 0.0
    %1171 = vmatpush1.msra.mxu0 0.0
    %1172 = vmatprep.mubr.f32.mxu0 0.0
    %1173 = vmatmul.mubr.f32.gmra.mrb[0].mxu0 %v1100
    %v1174 = vpop.f32.mrb[0].mxu0
    %v1175 = vadd.f32 0.0, %v1174
    %v1176 = vpop.f32.mrb[0].mxu0
    %v1177 = vadd.f32 0.0, %v1176
    %1178 = vdwg.mxu0
    %v1179 = vadd.f32 %v1086, %v1175
    %v1180 = vadd.f32 %v1088, %v1177
    %1181 = vrot.lane.b32.xlu0 %v908, 1
    %v1182 = vpop.permute.xlu0 %1181
    %1183 = vrot.lane.b32.xlu0 %v910, 1
    %v1184 = vpop.permute.xlu0 %1183
    %v1185 = vsel %vm333, %v1182, %v1184
    %v1186 = vsel %vm333, %v1184, %v1182
    %v1187 = vsel %vm338, %v1186, 0.0
    %v1188 = vsel %vm339, %v1185, 0.0
    %v1189 = vld [vmem:[%s342] sm:$0xff]
    %v1191 = vsel %vm70, %v1189, 0
    %v1194 = vsel %vm74, %v1187, 0
    %v1197 = vsel %vm74, %v1188, 0
    %1199 = vmatprep.subr.mxu0 %v1197
    %1200 = vmatpush1.msra.mxu0 %v1194
    %1201 = vmatprep.subr.mxu0 0.0
    %1202 = vmatpush1.msra.mxu0 0.0
    %1203 = vmatprep.subr.mxu0 0.0
    %1204 = vmatpush1.msra.mxu0 0.0
    %1205 = vmatprep.subr.mxu0 0.0
    %1206 = vmatpush1.msra.mxu0 0.0
    %1207 = vmatprep.subr.mxu0 0.0
    %1208 = vmatpush1.msra.mxu0 0.0
    %1209 = vmatprep.subr.mxu0 0.0
    %1210 = vmatpush1.msra.mxu0 0.0
    %1211 = vmatprep.subr.mxu0 0.0
    %1212 = vmatpush1.msra.mxu0 0.0
    %1213 = vmatprep.subr.mxu0 0.0
    %1214 = vmatpush1.msra.mxu0 0.0
    %1215 = vmatprep.subr.mxu0 0.0
    %1216 = vmatpush1.msra.mxu0 0.0
    %1217 = vmatprep.subr.mxu0 0.0
    %1218 = vmatpush1.msra.mxu0 0.0
    %1219 = vmatprep.subr.mxu0 0.0
    %1220 = vmatpush1.msra.mxu0 0.0
    %1221 = vmatprep.subr.mxu0 0.0
    %1222 = vmatpush1.msra.mxu0 0.0
    %1223 = vmatprep.subr.mxu0 0.0
    %1224 = vmatpush1.msra.mxu0 0.0
    %1225 = vmatprep.subr.mxu0 0.0
    %1226 = vmatpush1.msra.mxu0 0.0
    %1227 = vmatprep.subr.mxu0 0.0
    %1228 = vmatpush1.msra.mxu0 0.0
    %1229 = vmatprep.subr.mxu0 0.0
    %1230 = vmatpush1.msra.mxu0 0.0
    %1231 = vmatprep.subr.mxu0 0.0
    %1232 = vmatpush1.msra.mxu0 0.0
    %1233 = vmatprep.subr.mxu0 0.0
    %1234 = vmatpush1.msra.mxu0 0.0
    %1235 = vmatprep.subr.mxu0 0.0
    %1236 = vmatpush1.msra.mxu0 0.0
    %1237 = vmatprep.subr.mxu0 0.0
    %1238 = vmatpush1.msra.mxu0 0.0
    %1239 = vmatprep.subr.mxu0 0.0
    %1240 = vmatpush1.msra.mxu0 0.0
    %1241 = vmatprep.subr.mxu0 0.0
    %1242 = vmatpush1.msra.mxu0 0.0
    %1243 = vmatprep.subr.mxu0 0.0
    %1244 = vmatpush1.msra.mxu0 0.0
    %1245 = vmatprep.subr.mxu0 0.0
    %1246 = vmatpush1.msra.mxu0 0.0
    %1247 = vmatprep.subr.mxu0 0.0
    %1248 = vmatpush1.msra.mxu0 0.0
    %1249 = vmatprep.subr.mxu0 0.0
    %1250 = vmatpush1.msra.mxu0 0.0
    %1251 = vmatprep.subr.mxu0 0.0
    %1252 = vmatpush1.msra.mxu0 0.0
    %1253 = vmatprep.subr.mxu0 0.0
    %1254 = vmatpush1.msra.mxu0 0.0
    %1255 = vmatprep.subr.mxu0 0.0
    %1256 = vmatpush1.msra.mxu0 0.0
    %1257 = vmatprep.subr.mxu0 0.0
    %1258 = vmatpush1.msra.mxu0 0.0
    %1259 = vmatprep.subr.mxu0 0.0
    %1260 = vmatpush1.msra.mxu0 0.0
    %1261 = vmatprep.subr.mxu0 0.0
    %1262 = vmatpush1.msra.mxu0 0.0
    %1263 = vmatprep.mubr.f32.mxu0 0.0
    %1264 = vmatmul.mubr.f32.gmra.mrb[0].mxu0 %v1191
    %v1265 = vpop.f32.mrb[0].mxu0
    %v1266 = vadd.f32 0.0, %v1265
    %v1267 = vpop.f32.mrb[0].mxu0
    %v1268 = vadd.f32 0.0, %v1267
    %1269 = vdwg.mxu0
    %v1270 = vadd.f32 %v1179, %v1266
    %v1271 = vadd.f32 %v1180, %v1268
    %v1272 = vld [vmem:[%s426] sm:$0xff]
    %v1274 = vsel %vm70, %v1272, 0
    %v1276 = vsel %vm74, %v908, 0
    %v1278 = vsel %vm74, %v910, 0
    %1280 = vmatprep.subr.mxu0 %v1278
    %1281 = vmatpush1.msra.mxu0 %v1276
    %1282 = vmatprep.subr.mxu0 0.0
    %1283 = vmatpush1.msra.mxu0 0.0
    %1284 = vmatprep.subr.mxu0 0.0
    %1285 = vmatpush1.msra.mxu0 0.0
    %1286 = vmatprep.subr.mxu0 0.0
    %1287 = vmatpush1.msra.mxu0 0.0
    %1288 = vmatprep.subr.mxu0 0.0
    %1289 = vmatpush1.msra.mxu0 0.0
    %1290 = vmatprep.subr.mxu0 0.0
    %1291 = vmatpush1.msra.mxu0 0.0
    %1292 = vmatprep.subr.mxu0 0.0
    %1293 = vmatpush1.msra.mxu0 0.0
    %1294 = vmatprep.subr.mxu0 0.0
    %1295 = vmatpush1.msra.mxu0 0.0
    %1296 = vmatprep.subr.mxu0 0.0
    %1297 = vmatpush1.msra.mxu0 0.0
    %1298 = vmatprep.subr.mxu0 0.0
    %1299 = vmatpush1.msra.mxu0 0.0
    %1300 = vmatprep.subr.mxu0 0.0
    %1301 = vmatpush1.msra.mxu0 0.0
    %1302 = vmatprep.subr.mxu0 0.0
    %1303 = vmatpush1.msra.mxu0 0.0
    %1304 = vmatprep.subr.mxu0 0.0
    %1305 = vmatpush1.msra.mxu0 0.0
    %1306 = vmatprep.subr.mxu0 0.0
    %1307 = vmatpush1.msra.mxu0 0.0
    %1308 = vmatprep.subr.mxu0 0.0
    %1309 = vmatpush1.msra.mxu0 0.0
    %1310 = vmatprep.subr.mxu0 0.0
    %1311 = vmatpush1.msra.mxu0 0.0
    %1312 = vmatprep.subr.mxu0 0.0
    %1313 = vmatpush1.msra.mxu0 0.0
    %1314 = vmatprep.subr.mxu0 0.0
    %1315 = vmatpush1.msra.mxu0 0.0
    %1316 = vmatprep.subr.mxu0 0.0
    %1317 = vmatpush1.msra.mxu0 0.0
    %1318 = vmatprep.subr.mxu0 0.0
    %1319 = vmatpush1.msra.mxu0 0.0
    %1320 = vmatprep.subr.mxu0 0.0
    %1321 = vmatpush1.msra.mxu0 0.0
    %1322 = vmatprep.subr.mxu0 0.0
    %1323 = vmatpush1.msra.mxu0 0.0
    %1324 = vmatprep.subr.mxu0 0.0
    %1325 = vmatpush1.msra.mxu0 0.0
    %1326 = vmatprep.subr.mxu0 0.0
    %1327 = vmatpush1.msra.mxu0 0.0
    %1328 = vmatprep.subr.mxu0 0.0
    %1329 = vmatpush1.msra.mxu0 0.0
    %1330 = vmatprep.subr.mxu0 0.0
    %1331 = vmatpush1.msra.mxu0 0.0
    %1332 = vmatprep.subr.mxu0 0.0
    %1333 = vmatpush1.msra.mxu0 0.0
    %1334 = vmatprep.subr.mxu0 0.0
    %1335 = vmatpush1.msra.mxu0 0.0
    %1336 = vmatprep.subr.mxu0 0.0
    %1337 = vmatpush1.msra.mxu0 0.0
    %1338 = vmatprep.subr.mxu0 0.0
    %1339 = vmatpush1.msra.mxu0 0.0
    %1340 = vmatprep.subr.mxu0 0.0
    %1341 = vmatpush1.msra.mxu0 0.0
    %1342 = vmatprep.subr.mxu0 0.0
    %1343 = vmatpush1.msra.mxu0 0.0
    %1344 = vmatprep.mubr.f32.mxu0 0.0
    %1345 = vmatmul.mubr.f32.gmra.mrb[0].mxu0 %v1274
    %v1346 = vpop.f32.mrb[0].mxu0
    %v1347 = vadd.f32 0.0, %v1346
    %v1348 = vpop.f32.mrb[0].mxu0
    %v1349 = vadd.f32 0.0, %v1348
    %1350 = vdwg.mxu0
    %v1351 = vadd.f32 %v1270, %v1347
    %v1352 = vadd.f32 %v1271, %v1349
    %1353 = vrot.lane.b32.xlu0 %v908, 127
    %v1354 = vpop.permute.xlu0 %1353
    %1355 = vrot.lane.b32.xlu0 %v910, 127
    %v1356 = vpop.permute.xlu0 %1355
    %v1357 = vsel %vm512, %v1354, %v1356
    %v1358 = vsel %vm512, %v1356, %v1354
    %v1359 = vsel %vm517, %v1357, 0.0
    %v1360 = vsel %vm518, %v1358, 0.0
    %v1361 = vld [vmem:[%s521] sm:$0xff]
    %v1363 = vsel %vm70, %v1361, 0
    %v1366 = vsel %vm74, %v1359, 0
    %v1369 = vsel %vm74, %v1360, 0
    %1371 = vmatprep.subr.mxu0 %v1369
    %1372 = vmatpush1.msra.mxu0 %v1366
    %1373 = vmatprep.subr.mxu0 0.0
    %1374 = vmatpush1.msra.mxu0 0.0
    %1375 = vmatprep.subr.mxu0 0.0
    %1376 = vmatpush1.msra.mxu0 0.0
    %1377 = vmatprep.subr.mxu0 0.0
    %1378 = vmatpush1.msra.mxu0 0.0
    %1379 = vmatprep.subr.mxu0 0.0
    %1380 = vmatpush1.msra.mxu0 0.0
    %1381 = vmatprep.subr.mxu0 0.0
    %1382 = vmatpush1.msra.mxu0 0.0
    %1383 = vmatprep.subr.mxu0 0.0
    %1384 = vmatpush1.msra.mxu0 0.0
    %1385 = vmatprep.subr.mxu0 0.0
    %1386 = vmatpush1.msra.mxu0 0.0
    %1387 = vmatprep.subr.mxu0 0.0
    %1388 = vmatpush1.msra.mxu0 0.0
    %1389 = vmatprep.subr.mxu0 0.0
    %1390 = vmatpush1.msra.mxu0 0.0
    %1391 = vmatprep.subr.mxu0 0.0
    %1392 = vmatpush1.msra.mxu0 0.0
    %1393 = vmatprep.subr.mxu0 0.0
    %1394 = vmatpush1.msra.mxu0 0.0
    %1395 = vmatprep.subr.mxu0 0.0
    %1396 = vmatpush1.msra.mxu0 0.0
    %1397 = vmatprep.subr.mxu0 0.0
    %1398 = vmatpush1.msra.mxu0 0.0
    %1399 = vmatprep.subr.mxu0 0.0
    %1400 = vmatpush1.msra.mxu0 0.0
    %1401 = vmatprep.subr.mxu0 0.0
    %1402 = vmatpush1.msra.mxu0 0.0
    %1403 = vmatprep.subr.mxu0 0.0
    %1404 = vmatpush1.msra.mxu0 0.0
    %1405 = vmatprep.subr.mxu0 0.0
    %1406 = vmatpush1.msra.mxu0 0.0
    %1407 = vmatprep.subr.mxu0 0.0
    %1408 = vmatpush1.msra.mxu0 0.0
    %1409 = vmatprep.subr.mxu0 0.0
    %1410 = vmatpush1.msra.mxu0 0.0
    %1411 = vmatprep.subr.mxu0 0.0
    %1412 = vmatpush1.msra.mxu0 0.0
    %1413 = vmatprep.subr.mxu0 0.0
    %1414 = vmatpush1.msra.mxu0 0.0
    %1415 = vmatprep.subr.mxu0 0.0
    %1416 = vmatpush1.msra.mxu0 0.0
    %1417 = vmatprep.subr.mxu0 0.0
    %1418 = vmatpush1.msra.mxu0 0.0
    %1419 = vmatprep.subr.mxu0 0.0
    %1420 = vmatpush1.msra.mxu0 0.0
    %1421 = vmatprep.subr.mxu0 0.0
    %1422 = vmatpush1.msra.mxu0 0.0
    %1423 = vmatprep.subr.mxu0 0.0
    %1424 = vmatpush1.msra.mxu0 0.0
    %1425 = vmatprep.subr.mxu0 0.0
    %1426 = vmatpush1.msra.mxu0 0.0
    %1427 = vmatprep.subr.mxu0 0.0
    %1428 = vmatpush1.msra.mxu0 0.0
    %1429 = vmatprep.subr.mxu0 0.0
    %1430 = vmatpush1.msra.mxu0 0.0
    %1431 = vmatprep.subr.mxu0 0.0
    %1432 = vmatpush1.msra.mxu0 0.0
    %1433 = vmatprep.subr.mxu0 0.0
    %1434 = vmatpush1.msra.mxu0 0.0
    %1435 = vmatprep.mubr.f32.mxu0 0.0
    %1436 = vmatmul.mubr.f32.gmra.mrb[0].mxu0 %v1363
    %v1437 = vpop.f32.mrb[0].mxu0
    %v1438 = vadd.f32 0.0, %v1437
    %v1439 = vpop.f32.mrb[0].mxu0
    %v1440 = vadd.f32 0.0, %v1439
    %1441 = vdwg.mxu0
    %v1442 = vadd.f32 %v1351, %v1438
    %v1443 = vadd.f32 %v1352, %v1440
    %1444 = vrot.lane.b32.xlu0 %v908, 113
    %v1445 = vpop.permute.xlu0 %1444
    %1446 = vrot.lane.b32.xlu0 %v910, 113
    %v1447 = vpop.permute.xlu0 %1446
    %v1448 = vsel %vm609, %v1445, %v1447
    %v1449 = vsel %vm609, %v1447, %v1445
    %v1450 = vsel %vm614, %v1448, 0.0
    %v1451 = vsel %vm615, %v1449, 0.0
    %v1452 = vld [vmem:[%s618] sm:$0xff]
    %v1454 = vsel %vm70, %v1452, 0
    %v1457 = vsel %vm74, %v1450, 0
    %v1460 = vsel %vm74, %v1451, 0
    %1462 = vmatprep.subr.mxu0 %v1460
    %1463 = vmatpush1.msra.mxu0 %v1457
    %1464 = vmatprep.subr.mxu0 0.0
    %1465 = vmatpush1.msra.mxu0 0.0
    %1466 = vmatprep.subr.mxu0 0.0
    %1467 = vmatpush1.msra.mxu0 0.0
    %1468 = vmatprep.subr.mxu0 0.0
    %1469 = vmatpush1.msra.mxu0 0.0
    %1470 = vmatprep.subr.mxu0 0.0
    %1471 = vmatpush1.msra.mxu0 0.0
    %1472 = vmatprep.subr.mxu0 0.0
    %1473 = vmatpush1.msra.mxu0 0.0
    %1474 = vmatprep.subr.mxu0 0.0
    %1475 = vmatpush1.msra.mxu0 0.0
    %1476 = vmatprep.subr.mxu0 0.0
    %1477 = vmatpush1.msra.mxu0 0.0
    %1478 = vmatprep.subr.mxu0 0.0
    %1479 = vmatpush1.msra.mxu0 0.0
    %1480 = vmatprep.subr.mxu0 0.0
    %1481 = vmatpush1.msra.mxu0 0.0
    %1482 = vmatprep.subr.mxu0 0.0
    %1483 = vmatpush1.msra.mxu0 0.0
    %1484 = vmatprep.subr.mxu0 0.0
    %1485 = vmatpush1.msra.mxu0 0.0
    %1486 = vmatprep.subr.mxu0 0.0
    %1487 = vmatpush1.msra.mxu0 0.0
    %1488 = vmatprep.subr.mxu0 0.0
    %1489 = vmatpush1.msra.mxu0 0.0
    %1490 = vmatprep.subr.mxu0 0.0
    %1491 = vmatpush1.msra.mxu0 0.0
    %1492 = vmatprep.subr.mxu0 0.0
    %1493 = vmatpush1.msra.mxu0 0.0
    %1494 = vmatprep.subr.mxu0 0.0
    %1495 = vmatpush1.msra.mxu0 0.0
    %1496 = vmatprep.subr.mxu0 0.0
    %1497 = vmatpush1.msra.mxu0 0.0
    %1498 = vmatprep.subr.mxu0 0.0
    %1499 = vmatpush1.msra.mxu0 0.0
    %1500 = vmatprep.subr.mxu0 0.0
    %1501 = vmatpush1.msra.mxu0 0.0
    %1502 = vmatprep.subr.mxu0 0.0
    %1503 = vmatpush1.msra.mxu0 0.0
    %1504 = vmatprep.subr.mxu0 0.0
    %1505 = vmatpush1.msra.mxu0 0.0
    %1506 = vmatprep.subr.mxu0 0.0
    %1507 = vmatpush1.msra.mxu0 0.0
    %1508 = vmatprep.subr.mxu0 0.0
    %1509 = vmatpush1.msra.mxu0 0.0
    %1510 = vmatprep.subr.mxu0 0.0
    %1511 = vmatpush1.msra.mxu0 0.0
    %1512 = vmatprep.subr.mxu0 0.0
    %1513 = vmatpush1.msra.mxu0 0.0
    %1514 = vmatprep.subr.mxu0 0.0
    %1515 = vmatpush1.msra.mxu0 0.0
    %1516 = vmatprep.subr.mxu0 0.0
    %1517 = vmatpush1.msra.mxu0 0.0
    %1518 = vmatprep.subr.mxu0 0.0
    %1519 = vmatpush1.msra.mxu0 0.0
    %1520 = vmatprep.subr.mxu0 0.0
    %1521 = vmatpush1.msra.mxu0 0.0
    %1522 = vmatprep.subr.mxu0 0.0
    %1523 = vmatpush1.msra.mxu0 0.0
    %1524 = vmatprep.subr.mxu0 0.0
    %1525 = vmatpush1.msra.mxu0 0.0
    %1526 = vmatprep.mubr.f32.mxu0 0.0
    %1527 = vmatmul.mubr.f32.gmra.mrb[0].mxu0 %v1454
    %v1528 = vpop.f32.mrb[0].mxu0
    %v1529 = vadd.f32 0.0, %v1528
    %v1530 = vpop.f32.mrb[0].mxu0
    %v1531 = vadd.f32 0.0, %v1530
    %1532 = vdwg.mxu0
    %v1533 = vadd.f32 %v1442, %v1529
    %v1534 = vadd.f32 %v1443, %v1531
    %1535 = vrot.lane.b32.xlu0 %v908, 112
    %v1536 = vpop.permute.xlu0 %1535
    %1537 = vrot.lane.b32.xlu0 %v910, 112
    %v1538 = vpop.permute.xlu0 %1537
    %v1539 = vsel %vm706, %v1536, %v1538
    %v1540 = vsel %vm706, %v1538, %v1536
    %v1541 = vsel %vm711, %v1539, 0.0
    %v1542 = vsel %vm712, %v1540, 0.0
    %v1543 = vld [vmem:[%s715] sm:$0xff]
    %v1545 = vsel %vm70, %v1543, 0
    %v1548 = vsel %vm74, %v1541, 0
    %v1551 = vsel %vm74, %v1542, 0
    %1553 = vmatprep.subr.mxu0 %v1551
    %1554 = vmatpush1.msra.mxu0 %v1548
    %1555 = vmatprep.subr.mxu0 0.0
    %1556 = vmatpush1.msra.mxu0 0.0
    %1557 = vmatprep.subr.mxu0 0.0
    %1558 = vmatpush1.msra.mxu0 0.0
    %1559 = vmatprep.subr.mxu0 0.0
    %1560 = vmatpush1.msra.mxu0 0.0
    %1561 = vmatprep.subr.mxu0 0.0
    %1562 = vmatpush1.msra.mxu0 0.0
    %1563 = vmatprep.subr.mxu0 0.0
    %1564 = vmatpush1.msra.mxu0 0.0
    %1565 = vmatprep.subr.mxu0 0.0
    %1566 = vmatpush1.msra.mxu0 0.0
    %1567 = vmatprep.subr.mxu0 0.0
    %1568 = vmatpush1.msra.mxu0 0.0
    %1569 = vmatprep.subr.mxu0 0.0
    %1570 = vmatpush1.msra.mxu0 0.0
    %1571 = vmatprep.subr.mxu0 0.0
    %1572 = vmatpush1.msra.mxu0 0.0
    %1573 = vmatprep.subr.mxu0 0.0
    %1574 = vmatpush1.msra.mxu0 0.0
    %1575 = vmatprep.subr.mxu0 0.0
    %1576 = vmatpush1.msra.mxu0 0.0
    %1577 = vmatprep.subr.mxu0 0.0
    %1578 = vmatpush1.msra.mxu0 0.0
    %1579 = vmatprep.subr.mxu0 0.0
    %1580 = vmatpush1.msra.mxu0 0.0
    %1581 = vmatprep.subr.mxu0 0.0
    %1582 = vmatpush1.msra.mxu0 0.0
    %1583 = vmatprep.subr.mxu0 0.0
    %1584 = vmatpush1.msra.mxu0 0.0
    %1585 = vmatprep.subr.mxu0 0.0
    %1586 = vmatpush1.msra.mxu0 0.0
    %1587 = vmatprep.subr.mxu0 0.0
    %1588 = vmatpush1.msra.mxu0 0.0
    %1589 = vmatprep.subr.mxu0 0.0
    %1590 = vmatpush1.msra.mxu0 0.0
    %1591 = vmatprep.subr.mxu0 0.0
    %1592 = vmatpush1.msra.mxu0 0.0
    %1593 = vmatprep.subr.mxu0 0.0
    %1594 = vmatpush1.msra.mxu0 0.0
    %1595 = vmatprep.subr.mxu0 0.0
    %1596 = vmatpush1.msra.mxu0 0.0
    %1597 = vmatprep.subr.mxu0 0.0
    %1598 = vmatpush1.msra.mxu0 0.0
    %1599 = vmatprep.subr.mxu0 0.0
    %1600 = vmatpush1.msra.mxu0 0.0
    %1601 = vmatprep.subr.mxu0 0.0
    %1602 = vmatpush1.msra.mxu0 0.0
    %1603 = vmatprep.subr.mxu0 0.0
    %1604 = vmatpush1.msra.mxu0 0.0
    %1605 = vmatprep.subr.mxu0 0.0
    %1606 = vmatpush1.msra.mxu0 0.0
    %1607 = vmatprep.subr.mxu0 0.0
    %1608 = vmatpush1.msra.mxu0 0.0
    %1609 = vmatprep.subr.mxu0 0.0
    %1610 = vmatpush1.msra.mxu0 0.0
    %1611 = vmatprep.subr.mxu0 0.0
    %1612 = vmatpush1.msra.mxu0 0.0
    %1613 = vmatprep.subr.mxu0 0.0
    %1614 = vmatpush1.msra.mxu0 0.0
    %1615 = vmatprep.subr.mxu0 0.0
    %1616 = vmatpush1.msra.mxu0 0.0
    %1617 = vmatprep.mubr.f32.mxu0 0.0
    %1618 = vmatmul.mubr.f32.gmra.mrb[0].mxu0 %v1545
    %v1619 = vpop.f32.mrb[0].mxu0
    %v1620 = vadd.f32 0.0, %v1619
    %v1621 = vpop.f32.mrb[0].mxu0
    %v1622 = vadd.f32 0.0, %v1621
    %1623 = vdwg.mxu0
    %v1624 = vadd.f32 %v1533, %v1620
    %v1625 = vadd.f32 %v1534, %v1622
    %1626 = vrot.lane.b32.xlu0 %v908, 111
    %v1627 = vpop.permute.xlu0 %1626
    %1628 = vrot.lane.b32.xlu0 %v910, 111
    %v1629 = vpop.permute.xlu0 %1628
    %v1630 = vsel %vm803, %v1627, %v1629
    %v1631 = vsel %vm803, %v1629, %v1627
    %v1632 = vsel %vm808, %v1630, 0.0
    %v1633 = vsel %vm809, %v1631, 0.0
    %v1634 = vld [vmem:[%s812] sm:$0xff]
    %v1636 = vsel %vm70, %v1634, 0
    %v1639 = vsel %vm74, %v1632, 0
    %v1642 = vsel %vm74, %v1633, 0
    %1644 = vmatprep.subr.mxu0 %v1642
    %1645 = vmatpush1.msra.mxu0 %v1639
    %1646 = vmatprep.subr.mxu0 0.0
    %1647 = vmatpush1.msra.mxu0 0.0
    %1648 = vmatprep.subr.mxu0 0.0
    %1649 = vmatpush1.msra.mxu0 0.0
    %1650 = vmatprep.subr.mxu0 0.0
    %1651 = vmatpush1.msra.mxu0 0.0
    %1652 = vmatprep.subr.mxu0 0.0
    %1653 = vmatpush1.msra.mxu0 0.0
    %1654 = vmatprep.subr.mxu0 0.0
    %1655 = vmatpush1.msra.mxu0 0.0
    %1656 = vmatprep.subr.mxu0 0.0
    %1657 = vmatpush1.msra.mxu0 0.0
    %1658 = vmatprep.subr.mxu0 0.0
    %1659 = vmatpush1.msra.mxu0 0.0
    %1660 = vmatprep.subr.mxu0 0.0
    %1661 = vmatpush1.msra.mxu0 0.0
    %1662 = vmatprep.subr.mxu0 0.0
    %1663 = vmatpush1.msra.mxu0 0.0
    %1664 = vmatprep.subr.mxu0 0.0
    %1665 = vmatpush1.msra.mxu0 0.0
    %1666 = vmatprep.subr.mxu0 0.0
    %1667 = vmatpush1.msra.mxu0 0.0
    %1668 = vmatprep.subr.mxu0 0.0
    %1669 = vmatpush1.msra.mxu0 0.0
    %1670 = vmatprep.subr.mxu0 0.0
    %1671 = vmatpush1.msra.mxu0 0.0
    %1672 = vmatprep.subr.mxu0 0.0
    %1673 = vmatpush1.msra.mxu0 0.0
    %1674 = vmatprep.subr.mxu0 0.0
    %1675 = vmatpush1.msra.mxu0 0.0
    %1676 = vmatprep.subr.mxu0 0.0
    %1677 = vmatpush1.msra.mxu0 0.0
    %1678 = vmatprep.subr.mxu0 0.0
    %1679 = vmatpush1.msra.mxu0 0.0
    %1680 = vmatprep.subr.mxu0 0.0
    %1681 = vmatpush1.msra.mxu0 0.0
    %1682 = vmatprep.subr.mxu0 0.0
    %1683 = vmatpush1.msra.mxu0 0.0
    %1684 = vmatprep.subr.mxu0 0.0
    %1685 = vmatpush1.msra.mxu0 0.0
    %1686 = vmatprep.subr.mxu0 0.0
    %1687 = vmatpush1.msra.mxu0 0.0
    %1688 = vmatprep.subr.mxu0 0.0
    %1689 = vmatpush1.msra.mxu0 0.0
    %1690 = vmatprep.subr.mxu0 0.0
    %1691 = vmatpush1.msra.mxu0 0.0
    %1692 = vmatprep.subr.mxu0 0.0
    %1693 = vmatpush1.msra.mxu0 0.0
    %1694 = vmatprep.subr.mxu0 0.0
    %1695 = vmatpush1.msra.mxu0 0.0
    %1696 = vmatprep.subr.mxu0 0.0
    %1697 = vmatpush1.msra.mxu0 0.0
    %1698 = vmatprep.subr.mxu0 0.0
    %1699 = vmatpush1.msra.mxu0 0.0
    %1700 = vmatprep.subr.mxu0 0.0
    %1701 = vmatpush1.msra.mxu0 0.0
    %1702 = vmatprep.subr.mxu0 0.0
    %1703 = vmatpush1.msra.mxu0 0.0
    %1704 = vmatprep.subr.mxu0 0.0
    %1705 = vmatpush1.msra.mxu0 0.0
    %1706 = vmatprep.subr.mxu0 0.0
    %1707 = vmatpush1.msra.mxu0 0.0
    %1708 = vmatprep.mubr.f32.mxu0 0.0
    %1709 = vmatmul.mubr.f32.gmra.mrb[0].mxu0 %v1636
    %v1710 = vpop.f32.mrb[0].mxu0
    %v1711 = vadd.f32 0.0, %v1710
    %v1712 = vpop.f32.mrb[0].mxu0
    %v1713 = vadd.f32 0.0, %v1712
    %1714 = vdwg.mxu0
    %v1715 = vadd.f32 %v1624, %v1711
    %v1716 = vadd.f32 %v1625, %v1713
    %v1717 = vadd.f32 %v1715, %v899
    %v1718 = vadd.f32 %v1716, %v899
    %v1719 = vmax.f32 %v1717, 0.0
    %v1720 = vmax.f32 %v1718, 0.0
    %s1721 = scalar_lea.vmem [#allocation2], 16
    %1722 = vst [vmem:[%s1721] sm:$0xff] %v1719
    %1723 = vst [vmem:[%s1721 + $0x8] sm:$0xff] %v1720
    // Predicated region
    $region14: #{tpu_custom_call.1} parent=1 // pred_check
      _
    $region15: #{tpu_custom_call.1} parent=1 // pred_check_branch
      %1725 = sbr.rel (0) target = $region17
    $region16: #{tpu_custom_call.1} parent=1 // pred_region
      %s1727 = ssub.s32 512, 512
      %1728 = vsyncadd [#allocation3], %s1727
      %s1729 = sshll.u32 [#allocation2], 4
      %s1730 = int_to_ptr.vmem [resolvable:$true] %s1729
      %1735 = dma.vmem_to_hbm [thread:$0]  %s1730, 512, %s3, [#allocation3], 256, 256, 16
    $region17: #{tpu_custom_call.1} parent=1 // pred_fallthru
      _
    // Predicated region
    $region18: #{tpu_custom_call.1} parent=1 // pred_check
      _
    $region19: #{tpu_custom_call.1} parent=1 // pred_check_branch
      %1737 = sbr.rel (0) target = $region21
    $region20: #{tpu_custom_call.1} parent=1 // pred_region
      %1738 = dma.done [#allocation3], 512
    $region21: #{tpu_custom_call.1} parent=1 // pred_fallthru
      _
    %1739 = vsyncpa [#allocation3], 1

</llo_original>
